<compile_context>
chip_gen: v7x
topology: tpu7x:2x2x1
jax: 0.10.0
libtpu: 0.0.40
codegen_flags: <defaults>
</compile_context>

<pallas_src>
import functools

import jax
import jax.numpy as jnp
import numpy as np
from jax.experimental import pallas as pl
from jax.experimental.pallas import tpu as pltpu


def _conv_bn_taps(v, w_ref, b_ref, m_ref, *, H, W, Cp):
    """bn(conv3x3(v)) with the BN scale pre-folded into w_ref.

    v     : (Cp, H*W)    f32 activation, flattened spatial on the lane axis.
    w_ref : (9, Cp, Cp)  bf16 per-tap weights (tap t = dh*3 + dw), scale folded.
    b_ref : (Cp, 1)      f32 fused BatchNorm bias.
    m_ref : (9, Cp, H*W) f32 0/1 boundary masks for the rolled taps.
    returns (Cp, H*W) f32.
    """
    HW = H * W
    acc = None
    t = 0
    for dr in (-1, 0, 1):
        for dc in (-1, 0, 1):
            off = dr * W + dc
            if off == 0:
                tap = v                                    # center tap: no shift, no mask
            else:
                # out[p] = v[p + off] (validity enforced by the mask).
                shifted = pltpu.roll(v, (-off) % HW, 1)    # lane-axis rotate (XLU)
                tap = shifted * m_ref[t]                   # zero wrapped rows/cols
            d = jnp.dot(w_ref[t], tap.astype(jnp.bfloat16),
                        preferred_element_type=jnp.float32)
            acc = d if acc is None else acc + d
            t += 1
    return acc + b_ref[...]


def residual_block_kernel(x_ref, w1_ref, b1_ref, w2_ref, b2_ref, m_ref,
                          out_ref, *, H, W, Cp):
    # x_ref  : (1, Cp, H*W) f32     out_ref: (1, Cp, H*W) f32
    x = x_ref[0]                                           # (Cp, H*W) f32

    # conv1 -> bn1 -> relu
    y1 = jnp.maximum(
        _conv_bn_taps(x, w1_ref, b1_ref, m_ref, H=H, W=W, Cp=Cp), 0.0)
    # conv2 -> bn2
    y2 = _conv_bn_taps(y1, w2_ref, b2_ref, m_ref, H=H, W=W, Cp=Cp)
    # identity residual + relu  (lane-dense store: last dim = H*W)
    out_ref[...] = jnp.maximum(y2 + x, 0.0)[None]


def residual_block(x_nchw, w1, w2, bn1, bn2, eps=1e-5):
    """x_nchw: (N, C, H, W) f32; w*: (Cout, Cin, 3, 3); bn* = (gamma, beta, mean, var)."""
    N, Cin, H, W = x_nchw.shape
    Cout = w1.shape[0]
    assert Cin == Cout, "identity residual path requires in_channels == out_channels"
    C = Cout
    Cp = ((C + 7) // 8) * 8          # sublane-aligned channel count
    HW = H * W

    # NCHW -> (N, C, H*W): free row-major reshape.  Channels on sublanes,
    # flattened spatial on lanes (lane-dense: HW is a multiple of 128 here).
    x = jnp.asarray(x_nchw, jnp.float32).reshape(N, C, HW)
    if Cp != C:
        x = jnp.pad(x, ((0, 0), (0, Cp - C), (0, 0)))

    def fuse(w, bn):
        g, b, m, v = (jnp.asarray(a, jnp.float32) for a in bn)
        s = g / jnp.sqrt(v + eps)                     # (C,)
        bias = b - m * s                              # (C,)
        # OIHW -> (kh, kw, Cout, Cin) -> (9, Cout, Cin); fold the BN scale into
        # the out-channel rows, pad channels to Cp, cast to bf16 for the MXU.
        wt = jnp.transpose(jnp.asarray(w, jnp.float32), (2, 3, 0, 1)).reshape(9, C, C)
        wt = wt * s[None, :, None]
        wt = jnp.pad(wt, ((0, 0), (0, Cp - C), (0, Cp - C))).astype(jnp.bfloat16)
        bias = jnp.pad(bias, (0, Cp - C)).reshape(Cp, 1)
        return wt, bias

    w1m, b1v = fuse(w1, bn1)
    w2m, b2v = fuse(w2, bn2)

    # Per-tap 0/1 validity masks for the rolled flattened activation
    # (zero entries that wrapped across an image row / past the image edge).
    masks = np.empty((9, Cp, HW), np.float32)
    hh, ww = np.meshgrid(np.arange(H), np.arange(W), indexing="ij")
    t = 0
    for dr in (-1, 0, 1):
        for dc in (-1, 0, 1):
            valid = ((hh + dr >= 0) & (hh + dr < H) &
                     (ww + dc >= 0) & (ww + dc < W)).reshape(HW)
            masks[t] = valid[None, :].astype(np.float32)
            t += 1
    masks = jnp.asarray(masks)

    kernel = functools.partial(residual_block_kernel, H=H, W=W, Cp=Cp)

    # VMEM budget: double-buffered lane-dense activation tiles + resident
    # constants + headroom for in-kernel f32 tap/accumulator temporaries.
    # Capped at 48 MiB so the request stays inside v7x's 64 MiB physical VMEM.
    act_tile = Cp * HW * 4
    const_bytes = 2 * 9 * Cp * Cp * 2 + 2 * Cp * 128 * 4 + 9 * Cp * HW * 4
    vmem_limit = int(min(48 * 1024 * 1024,
                         max(16 * 1024 * 1024,
                             (4 + 32) * act_tile + const_bytes)))

    out = pl.pallas_call(
        kernel,
        out_shape=jax.ShapeDtypeStruct((N, Cp, HW), jnp.float32),
        grid_spec=pltpu.PrefetchScalarGridSpec(
            num_scalar_prefetch=0,
            grid=(N,),                          # one image per step; >=2 parallel steps
            in_specs=[
                pl.BlockSpec((1, Cp, HW), lambda n: (n, 0, 0)),   # x
                pl.BlockSpec((9, Cp, Cp), lambda n: (0, 0, 0)),   # w1 (scale folded)
                pl.BlockSpec((Cp, 1), lambda n: (0, 0)),          # b1
                pl.BlockSpec((9, Cp, Cp), lambda n: (0, 0, 0)),   # w2 (scale folded)
                pl.BlockSpec((Cp, 1), lambda n: (0, 0)),          # b2
                pl.BlockSpec((9, Cp, HW), lambda n: (0, 0, 0)),   # boundary masks
            ],
            out_specs=pl.BlockSpec((1, Cp, HW), lambda n: (n, 0, 0)),
        ),
        compiler_params=pltpu.CompilerParams(
            dimension_semantics=("parallel",),
            vmem_limit_bytes=vmem_limit),
    )(x, w1m, b1v, w2m, b2v, masks)

    # Strip channel padding and return to NCHW (free row-major reshape).
    return out[:, :C, :].reshape(N, C, H, W)


def _reference(x_nchw, w1, w2, bn1, bn2, eps=1e-5):
    """Pure-JAX reference (NCHW, lax.conv). Conv operands are cast to bf16
    with f32 accumulation to mirror the kernel's MXU precision choice; the
    BN / residual / ReLU math stays in f32 exactly like the kernel."""
    def conv3x3(x, w):
        return jax.lax.conv_general_dilated(
            x.astype(jnp.bfloat16), w.astype(jnp.bfloat16),
            window_strides=(1, 1), padding=((1, 1), (1, 1)),
            dimension_numbers=("NCHW", "OIHW", "NCHW"),
            preferred_element_type=jnp.float32)

    def bn(x, p):
        g, b, m, v = p
        s = g / jnp.sqrt(v + eps)
        return x * s[None, :, None, None] + (b - m * s)[None, :, None, None]

    out = jax.nn.relu(bn(conv3x3(x_nchw, w1), bn1))
    out = bn(conv3x3(out, w2), bn2)
    return jax.nn.relu(out + x_nchw)


if __name__ == "__main__":
    N, C, H, W = 2, 4, 16, 16  # in_channels == out_channels == 4, stride=1
    key = jax.random.PRNGKey(0)
    kx, kw1, kw2, kb1, kb2 = jax.random.split(key, 5)

    x = jax.random.normal(kx, (N, C, H, W), jnp.float32)

    w1 = 0.1 * jax.random.normal(kw1, (C, C, 3, 3), jnp.float32)
    w2 = 0.1 * jax.random.normal(kw2, (C, C, 3, 3), jnp.float32)

    def make_bn(k):
        k1, k2, k3, k4 = jax.random.split(k, 4)
        gamma = 1.0 + 0.1 * jax.random.normal(k1, (C,), jnp.float32)
        beta = 0.1 * jax.random.normal(k2, (C,), jnp.float32)
        mean = 0.1 * jax.random.normal(k3, (C,), jnp.float32)
        var = 0.5 + 0.5 * jnp.abs(jax.random.normal(k4, (C,), jnp.float32))
        return (gamma, beta, mean, var)

    bn1 = make_bn(kb1)
    bn2 = make_bn(kb2)

    out = jax.block_until_ready(residual_block(x, w1, w2, bn1, bn2))
    ref = jax.block_until_ready(_reference(x, w1, w2, bn1, bn2))

    # Tolerance accounts for bf16 matmul operands (f32 accumulation) and the
    # BN-scale fold into the bf16 weights.
    np.testing.assert_allclose(np.asarray(out), np.asarray(ref),
                               rtol=3e-2, atol=3e-2)

    print("KERNEL_OK")
</pallas_src>

<mosaic_0001>
module attributes {stable_mosaic.version = 11 : i64} {
  func.func @residual_block_kernel(%arg0: i32, %arg1: memref<1x8x256xf32, #tpu.memory_space<vmem>>, %arg2: memref<9x8x8xbf16, #tpu.memory_space<vmem>>, %arg3: memref<8x1xf32, #tpu.memory_space<vmem>>, %arg4: memref<9x8x8xbf16, #tpu.memory_space<vmem>>, %arg5: memref<8x1xf32, #tpu.memory_space<vmem>>, %arg6: memref<9x8x256xf32, #tpu.memory_space<vmem>>, %arg7: memref<1x8x256xf32, #tpu.memory_space<vmem>>) attributes {dimension_semantics = [#tpu.dimension_semantics<parallel>], iteration_bounds = array<i64: 2>, scalar_prefetch = 0 : i64, scratch_operands = 0 : i64, tpu.core_type = #tpu.core_type<tc>, window_params = [{transform_indices = @transform_0, window_bounds = array<i64: 1, 8, 256>}, {pipeline_mode = #tpu.pipeline_mode<synchronous>, transform_indices = @transform_1, window_bounds = array<i64: 9, 8, 8>}, {pipeline_mode = #tpu.pipeline_mode<synchronous>, transform_indices = @transform_2, window_bounds = array<i64: 8, 1>}, {pipeline_mode = #tpu.pipeline_mode<synchronous>, transform_indices = @transform_3, window_bounds = array<i64: 9, 8, 8>}, {pipeline_mode = #tpu.pipeline_mode<synchronous>, transform_indices = @transform_4, window_bounds = array<i64: 8, 1>}, {pipeline_mode = #tpu.pipeline_mode<synchronous>, transform_indices = @transform_5, window_bounds = array<i64: 9, 8, 256>}, {transform_indices = @transform_6, window_bounds = array<i64: 1, 8, 256>}]} {
    %c0 = arith.constant 0 : index
    %c0_0 = arith.constant 0 : index
    %c0_1 = arith.constant 0 : index
    %0 = vector.load %arg1[%c0, %c0_0, %c0_1] : memref<1x8x256xf32, #tpu.memory_space<vmem>>, vector<1x8x256xf32>
    %1 = vector.shape_cast %0 : vector<1x8x256xf32> to vector<8x256xf32>
    %c17_i32 = arith.constant 17 : i32
    %2 = tpu.dynamic_rotate %1 by %c17_i32 dim 1 : vector<8x256xf32>, i32 -> vector<8x256xf32>
    %c0_2 = arith.constant 0 : index
    %c0_3 = arith.constant 0 : index
    %c0_4 = arith.constant 0 : index
    %3 = vector.load %arg6[%c0_2, %c0_3, %c0_4] : memref<9x8x256xf32, #tpu.memory_space<vmem>>, vector<1x8x256xf32>
    %4 = vector.shape_cast %3 : vector<1x8x256xf32> to vector<8x256xf32>
    %5 = arith.mulf %2, %4 : vector<8x256xf32>
    %c0_5 = arith.constant 0 : index
    %c0_6 = arith.constant 0 : index
    %c0_7 = arith.constant 0 : index
    %6 = vector.load %arg2[%c0_5, %c0_6, %c0_7] : memref<9x8x8xbf16, #tpu.memory_space<vmem>>, vector<1x8x8xbf16>
    %7 = vector.shape_cast %6 : vector<1x8x8xbf16> to vector<8x8xbf16>
    %8 = arith.truncf %5 : vector<8x256xf32> to vector<8x256xbf16>
    %cst = arith.constant dense<0.000000e+00> : vector<8x256xf32>
    %9 = tpu.matmul %7, %8, %cst {dimension_numbers = #tpu.dot_dimension_numbers<[1], [0], [0], [1], [0, 0, 1, 1], [], []>} : vector<8x8xbf16>, vector<8x256xbf16>, vector<8x256xf32> -> vector<8x256xf32>
    %c16_i32 = arith.constant 16 : i32
    %10 = tpu.dynamic_rotate %1 by %c16_i32 dim 1 : vector<8x256xf32>, i32 -> vector<8x256xf32>
    %c1 = arith.constant 1 : index
    %c0_8 = arith.constant 0 : index
    %c0_9 = arith.constant 0 : index
    %11 = vector.load %arg6[%c1, %c0_8, %c0_9] : memref<9x8x256xf32, #tpu.memory_space<vmem>>, vector<1x8x256xf32>
    %12 = vector.shape_cast %11 : vector<1x8x256xf32> to vector<8x256xf32>
    %13 = arith.mulf %10, %12 : vector<8x256xf32>
    %c1_10 = arith.constant 1 : index
    %c0_11 = arith.constant 0 : index
    %c0_12 = arith.constant 0 : index
    %14 = vector.load %arg2[%c1_10, %c0_11, %c0_12] : memref<9x8x8xbf16, #tpu.memory_space<vmem>>, vector<1x8x8xbf16>
    %15 = vector.shape_cast %14 : vector<1x8x8xbf16> to vector<8x8xbf16>
    %16 = arith.truncf %13 : vector<8x256xf32> to vector<8x256xbf16>
    %cst_13 = arith.constant dense<0.000000e+00> : vector<8x256xf32>
    %17 = tpu.matmul %15, %16, %cst_13 {dimension_numbers = #tpu.dot_dimension_numbers<[1], [0], [0], [1], [0, 0, 1, 1], [], []>} : vector<8x8xbf16>, vector<8x256xbf16>, vector<8x256xf32> -> vector<8x256xf32>
    %18 = arith.addf %9, %17 : vector<8x256xf32>
    %c15_i32 = arith.constant 15 : i32
    %19 = tpu.dynamic_rotate %1 by %c15_i32 dim 1 : vector<8x256xf32>, i32 -> vector<8x256xf32>
    %c2 = arith.constant 2 : index
    %c0_14 = arith.constant 0 : index
    %c0_15 = arith.constant 0 : index
    %20 = vector.load %arg6[%c2, %c0_14, %c0_15] : memref<9x8x256xf32, #tpu.memory_space<vmem>>, vector<1x8x256xf32>
    %21 = vector.shape_cast %20 : vector<1x8x256xf32> to vector<8x256xf32>
    %22 = arith.mulf %19, %21 : vector<8x256xf32>
    %c2_16 = arith.constant 2 : index
    %c0_17 = arith.constant 0 : index
    %c0_18 = arith.constant 0 : index
    %23 = vector.load %arg2[%c2_16, %c0_17, %c0_18] : memref<9x8x8xbf16, #tpu.memory_space<vmem>>, vector<1x8x8xbf16>
    %24 = vector.shape_cast %23 : vector<1x8x8xbf16> to vector<8x8xbf16>
    %25 = arith.truncf %22 : vector<8x256xf32> to vector<8x256xbf16>
    %cst_19 = arith.constant dense<0.000000e+00> : vector<8x256xf32>
    %26 = tpu.matmul %24, %25, %cst_19 {dimension_numbers = #tpu.dot_dimension_numbers<[1], [0], [0], [1], [0, 0, 1, 1], [], []>} : vector<8x8xbf16>, vector<8x256xbf16>, vector<8x256xf32> -> vector<8x256xf32>
    %27 = arith.addf %18, %26 : vector<8x256xf32>
    %c1_i32 = arith.constant 1 : i32
    %28 = tpu.dynamic_rotate %1 by %c1_i32 dim 1 : vector<8x256xf32>, i32 -> vector<8x256xf32>
    %c3 = arith.constant 3 : index
    %c0_20 = arith.constant 0 : index
    %c0_21 = arith.constant 0 : index
    %29 = vector.load %arg6[%c3, %c0_20, %c0_21] : memref<9x8x256xf32, #tpu.memory_space<vmem>>, vector<1x8x256xf32>
    %30 = vector.shape_cast %29 : vector<1x8x256xf32> to vector<8x256xf32>
    %31 = arith.mulf %28, %30 : vector<8x256xf32>
    %c3_22 = arith.constant 3 : index
    %c0_23 = arith.constant 0 : index
    %c0_24 = arith.constant 0 : index
    %32 = vector.load %arg2[%c3_22, %c0_23, %c0_24] : memref<9x8x8xbf16, #tpu.memory_space<vmem>>, vector<1x8x8xbf16>
    %33 = vector.shape_cast %32 : vector<1x8x8xbf16> to vector<8x8xbf16>
    %34 = arith.truncf %31 : vector<8x256xf32> to vector<8x256xbf16>
    %cst_25 = arith.constant dense<0.000000e+00> : vector<8x256xf32>
    %35 = tpu.matmul %33, %34, %cst_25 {dimension_numbers = #tpu.dot_dimension_numbers<[1], [0], [0], [1], [0, 0, 1, 1], [], []>} : vector<8x8xbf16>, vector<8x256xbf16>, vector<8x256xf32> -> vector<8x256xf32>
    %36 = arith.addf %27, %35 : vector<8x256xf32>
    %c4 = arith.constant 4 : index
    %c0_26 = arith.constant 0 : index
    %c0_27 = arith.constant 0 : index
    %37 = vector.load %arg2[%c4, %c0_26, %c0_27] : memref<9x8x8xbf16, #tpu.memory_space<vmem>>, vector<1x8x8xbf16>
    %38 = vector.shape_cast %37 : vector<1x8x8xbf16> to vector<8x8xbf16>
    %39 = arith.truncf %1 : vector<8x256xf32> to vector<8x256xbf16>
    %cst_28 = arith.constant dense<0.000000e+00> : vector<8x256xf32>
    %40 = tpu.matmul %38, %39, %cst_28 {dimension_numbers = #tpu.dot_dimension_numbers<[1], [0], [0], [1], [0, 0, 1, 1], [], []>} : vector<8x8xbf16>, vector<8x256xbf16>, vector<8x256xf32> -> vector<8x256xf32>
    %41 = arith.addf %36, %40 : vector<8x256xf32>
    %c255_i32 = arith.constant 255 : i32
    %42 = tpu.dynamic_rotate %1 by %c255_i32 dim 1 : vector<8x256xf32>, i32 -> vector<8x256xf32>
    %c5 = arith.constant 5 : index
    %c0_29 = arith.constant 0 : index
    %c0_30 = arith.constant 0 : index
    %43 = vector.load %arg6[%c5, %c0_29, %c0_30] : memref<9x8x256xf32, #tpu.memory_space<vmem>>, vector<1x8x256xf32>
    %44 = vector.shape_cast %43 : vector<1x8x256xf32> to vector<8x256xf32>
    %45 = arith.mulf %42, %44 : vector<8x256xf32>
    %c5_31 = arith.constant 5 : index
    %c0_32 = arith.constant 0 : index
    %c0_33 = arith.constant 0 : index
    %46 = vector.load %arg2[%c5_31, %c0_32, %c0_33] : memref<9x8x8xbf16, #tpu.memory_space<vmem>>, vector<1x8x8xbf16>
    %47 = vector.shape_cast %46 : vector<1x8x8xbf16> to vector<8x8xbf16>
    %48 = arith.truncf %45 : vector<8x256xf32> to vector<8x256xbf16>
    %cst_34 = arith.constant dense<0.000000e+00> : vector<8x256xf32>
    %49 = tpu.matmul %47, %48, %cst_34 {dimension_numbers = #tpu.dot_dimension_numbers<[1], [0], [0], [1], [0, 0, 1, 1], [], []>} : vector<8x8xbf16>, vector<8x256xbf16>, vector<8x256xf32> -> vector<8x256xf32>
    %50 = arith.addf %41, %49 : vector<8x256xf32>
    %c241_i32 = arith.constant 241 : i32
    %51 = tpu.dynamic_rotate %1 by %c241_i32 dim 1 : vector<8x256xf32>, i32 -> vector<8x256xf32>
    %c6 = arith.constant 6 : index
    %c0_35 = arith.constant 0 : index
    %c0_36 = arith.constant 0 : index
    %52 = vector.load %arg6[%c6, %c0_35, %c0_36] : memref<9x8x256xf32, #tpu.memory_space<vmem>>, vector<1x8x256xf32>
    %53 = vector.shape_cast %52 : vector<1x8x256xf32> to vector<8x256xf32>
    %54 = arith.mulf %51, %53 : vector<8x256xf32>
    %c6_37 = arith.constant 6 : index
    %c0_38 = arith.constant 0 : index
    %c0_39 = arith.constant 0 : index
    %55 = vector.load %arg2[%c6_37, %c0_38, %c0_39] : memref<9x8x8xbf16, #tpu.memory_space<vmem>>, vector<1x8x8xbf16>
    %56 = vector.shape_cast %55 : vector<1x8x8xbf16> to vector<8x8xbf16>
    %57 = arith.truncf %54 : vector<8x256xf32> to vector<8x256xbf16>
    %cst_40 = arith.constant dense<0.000000e+00> : vector<8x256xf32>
    %58 = tpu.matmul %56, %57, %cst_40 {dimension_numbers = #tpu.dot_dimension_numbers<[1], [0], [0], [1], [0, 0, 1, 1], [], []>} : vector<8x8xbf16>, vector<8x256xbf16>, vector<8x256xf32> -> vector<8x256xf32>
    %59 = arith.addf %50, %58 : vector<8x256xf32>
    %c240_i32 = arith.constant 240 : i32
    %60 = tpu.dynamic_rotate %1 by %c240_i32 dim 1 : vector<8x256xf32>, i32 -> vector<8x256xf32>
    %c7 = arith.constant 7 : index
    %c0_41 = arith.constant 0 : index
    %c0_42 = arith.constant 0 : index
    %61 = vector.load %arg6[%c7, %c0_41, %c0_42] : memref<9x8x256xf32, #tpu.memory_space<vmem>>, vector<1x8x256xf32>
    %62 = vector.shape_cast %61 : vector<1x8x256xf32> to vector<8x256xf32>
    %63 = arith.mulf %60, %62 : vector<8x256xf32>
    %c7_43 = arith.constant 7 : index
    %c0_44 = arith.constant 0 : index
    %c0_45 = arith.constant 0 : index
    %64 = vector.load %arg2[%c7_43, %c0_44, %c0_45] : memref<9x8x8xbf16, #tpu.memory_space<vmem>>, vector<1x8x8xbf16>
    %65 = vector.shape_cast %64 : vector<1x8x8xbf16> to vector<8x8xbf16>
    %66 = arith.truncf %63 : vector<8x256xf32> to vector<8x256xbf16>
    %cst_46 = arith.constant dense<0.000000e+00> : vector<8x256xf32>
    %67 = tpu.matmul %65, %66, %cst_46 {dimension_numbers = #tpu.dot_dimension_numbers<[1], [0], [0], [1], [0, 0, 1, 1], [], []>} : vector<8x8xbf16>, vector<8x256xbf16>, vector<8x256xf32> -> vector<8x256xf32>
    %68 = arith.addf %59, %67 : vector<8x256xf32>
    %c239_i32 = arith.constant 239 : i32
    %69 = tpu.dynamic_rotate %1 by %c239_i32 dim 1 : vector<8x256xf32>, i32 -> vector<8x256xf32>
    %c8 = arith.constant 8 : index
    %c0_47 = arith.constant 0 : index
    %c0_48 = arith.constant 0 : index
    %70 = vector.load %arg6[%c8, %c0_47, %c0_48] : memref<9x8x256xf32, #tpu.memory_space<vmem>>, vector<1x8x256xf32>
    %71 = vector.shape_cast %70 : vector<1x8x256xf32> to vector<8x256xf32>
    %72 = arith.mulf %69, %71 : vector<8x256xf32>
    %c8_49 = arith.constant 8 : index
    %c0_50 = arith.constant 0 : index
    %c0_51 = arith.constant 0 : index
    %73 = vector.load %arg2[%c8_49, %c0_50, %c0_51] : memref<9x8x8xbf16, #tpu.memory_space<vmem>>, vector<1x8x8xbf16>
    %74 = vector.shape_cast %73 : vector<1x8x8xbf16> to vector<8x8xbf16>
    %75 = arith.truncf %72 : vector<8x256xf32> to vector<8x256xbf16>
    %cst_52 = arith.constant dense<0.000000e+00> : vector<8x256xf32>
    %76 = tpu.matmul %74, %75, %cst_52 {dimension_numbers = #tpu.dot_dimension_numbers<[1], [0], [0], [1], [0, 0, 1, 1], [], []>} : vector<8x8xbf16>, vector<8x256xbf16>, vector<8x256xf32> -> vector<8x256xf32>
    %77 = arith.addf %68, %76 : vector<8x256xf32>
    %c0_53 = arith.constant 0 : index
    %c0_54 = arith.constant 0 : index
    %78 = vector.load %arg3[%c0_53, %c0_54] : memref<8x1xf32, #tpu.memory_space<vmem>>, vector<8x1xf32>
    %79 = vector.broadcast %78 : vector<8x1xf32> to vector<8x256xf32>
    %80 = arith.addf %77, %79 : vector<8x256xf32>
    %cst_55 = arith.constant 0.000000e+00 : f32
    %81 = vector.broadcast %cst_55 : f32 to vector<8x256xf32>
    %82 = arith.maximumf %80, %81 : vector<8x256xf32>
    %c17_i32_56 = arith.constant 17 : i32
    %83 = tpu.dynamic_rotate %82 by %c17_i32_56 dim 1 : vector<8x256xf32>, i32 -> vector<8x256xf32>
    %c0_57 = arith.constant 0 : index
    %c0_58 = arith.constant 0 : index
    %c0_59 = arith.constant 0 : index
    %84 = vector.load %arg6[%c0_57, %c0_58, %c0_59] : memref<9x8x256xf32, #tpu.memory_space<vmem>>, vector<1x8x256xf32>
    %85 = vector.shape_cast %84 : vector<1x8x256xf32> to vector<8x256xf32>
    %86 = arith.mulf %83, %85 : vector<8x256xf32>
    %c0_60 = arith.constant 0 : index
    %c0_61 = arith.constant 0 : index
    %c0_62 = arith.constant 0 : index
    %87 = vector.load %arg4[%c0_60, %c0_61, %c0_62] : memref<9x8x8xbf16, #tpu.memory_space<vmem>>, vector<1x8x8xbf16>
    %88 = vector.shape_cast %87 : vector<1x8x8xbf16> to vector<8x8xbf16>
    %89 = arith.truncf %86 : vector<8x256xf32> to vector<8x256xbf16>
    %cst_63 = arith.constant dense<0.000000e+00> : vector<8x256xf32>
    %90 = tpu.matmul %88, %89, %cst_63 {dimension_numbers = #tpu.dot_dimension_numbers<[1], [0], [0], [1], [0, 0, 1, 1], [], []>} : vector<8x8xbf16>, vector<8x256xbf16>, vector<8x256xf32> -> vector<8x256xf32>
    %c16_i32_64 = arith.constant 16 : i32
    %91 = tpu.dynamic_rotate %82 by %c16_i32_64 dim 1 : vector<8x256xf32>, i32 -> vector<8x256xf32>
    %c1_65 = arith.constant 1 : index
    %c0_66 = arith.constant 0 : index
    %c0_67 = arith.constant 0 : index
    %92 = vector.load %arg6[%c1_65, %c0_66, %c0_67] : memref<9x8x256xf32, #tpu.memory_space<vmem>>, vector<1x8x256xf32>
    %93 = vector.shape_cast %92 : vector<1x8x256xf32> to vector<8x256xf32>
    %94 = arith.mulf %91, %93 : vector<8x256xf32>
    %c1_68 = arith.constant 1 : index
    %c0_69 = arith.constant 0 : index
    %c0_70 = arith.constant 0 : index
    %95 = vector.load %arg4[%c1_68, %c0_69, %c0_70] : memref<9x8x8xbf16, #tpu.memory_space<vmem>>, vector<1x8x8xbf16>
    %96 = vector.shape_cast %95 : vector<1x8x8xbf16> to vector<8x8xbf16>
    %97 = arith.truncf %94 : vector<8x256xf32> to vector<8x256xbf16>
    %cst_71 = arith.constant dense<0.000000e+00> : vector<8x256xf32>
    %98 = tpu.matmul %96, %97, %cst_71 {dimension_numbers = #tpu.dot_dimension_numbers<[1], [0], [0], [1], [0, 0, 1, 1], [], []>} : vector<8x8xbf16>, vector<8x256xbf16>, vector<8x256xf32> -> vector<8x256xf32>
    %99 = arith.addf %90, %98 : vector<8x256xf32>
    %c15_i32_72 = arith.constant 15 : i32
    %100 = tpu.dynamic_rotate %82 by %c15_i32_72 dim 1 : vector<8x256xf32>, i32 -> vector<8x256xf32>
    %c2_73 = arith.constant 2 : index
    %c0_74 = arith.constant 0 : index
    %c0_75 = arith.constant 0 : index
    %101 = vector.load %arg6[%c2_73, %c0_74, %c0_75] : memref<9x8x256xf32, #tpu.memory_space<vmem>>, vector<1x8x256xf32>
    %102 = vector.shape_cast %101 : vector<1x8x256xf32> to vector<8x256xf32>
    %103 = arith.mulf %100, %102 : vector<8x256xf32>
    %c2_76 = arith.constant 2 : index
    %c0_77 = arith.constant 0 : index
    %c0_78 = arith.constant 0 : index
    %104 = vector.load %arg4[%c2_76, %c0_77, %c0_78] : memref<9x8x8xbf16, #tpu.memory_space<vmem>>, vector<1x8x8xbf16>
    %105 = vector.shape_cast %104 : vector<1x8x8xbf16> to vector<8x8xbf16>
    %106 = arith.truncf %103 : vector<8x256xf32> to vector<8x256xbf16>
    %cst_79 = arith.constant dense<0.000000e+00> : vector<8x256xf32>
    %107 = tpu.matmul %105, %106, %cst_79 {dimension_numbers = #tpu.dot_dimension_numbers<[1], [0], [0], [1], [0, 0, 1, 1], [], []>} : vector<8x8xbf16>, vector<8x256xbf16>, vector<8x256xf32> -> vector<8x256xf32>
    %108 = arith.addf %99, %107 : vector<8x256xf32>
    %c1_i32_80 = arith.constant 1 : i32
    %109 = tpu.dynamic_rotate %82 by %c1_i32_80 dim 1 : vector<8x256xf32>, i32 -> vector<8x256xf32>
    %c3_81 = arith.constant 3 : index
    %c0_82 = arith.constant 0 : index
    %c0_83 = arith.constant 0 : index
    %110 = vector.load %arg6[%c3_81, %c0_82, %c0_83] : memref<9x8x256xf32, #tpu.memory_space<vmem>>, vector<1x8x256xf32>
    %111 = vector.shape_cast %110 : vector<1x8x256xf32> to vector<8x256xf32>
    %112 = arith.mulf %109, %111 : vector<8x256xf32>
    %c3_84 = arith.constant 3 : index
    %c0_85 = arith.constant 0 : index
    %c0_86 = arith.constant 0 : index
    %113 = vector.load %arg4[%c3_84, %c0_85, %c0_86] : memref<9x8x8xbf16, #tpu.memory_space<vmem>>, vector<1x8x8xbf16>
    %114 = vector.shape_cast %113 : vector<1x8x8xbf16> to vector<8x8xbf16>
    %115 = arith.truncf %112 : vector<8x256xf32> to vector<8x256xbf16>
    %cst_87 = arith.constant dense<0.000000e+00> : vector<8x256xf32>
    %116 = tpu.matmul %114, %115, %cst_87 {dimension_numbers = #tpu.dot_dimension_numbers<[1], [0], [0], [1], [0, 0, 1, 1], [], []>} : vector<8x8xbf16>, vector<8x256xbf16>, vector<8x256xf32> -> vector<8x256xf32>
    %117 = arith.addf %108, %116 : vector<8x256xf32>
    %c4_88 = arith.constant 4 : index
    %c0_89 = arith.constant 0 : index
    %c0_90 = arith.constant 0 : index
    %118 = vector.load %arg4[%c4_88, %c0_89, %c0_90] : memref<9x8x8xbf16, #tpu.memory_space<vmem>>, vector<1x8x8xbf16>
    %119 = vector.shape_cast %118 : vector<1x8x8xbf16> to vector<8x8xbf16>
    %120 = arith.truncf %82 : vector<8x256xf32> to vector<8x256xbf16>
    %cst_91 = arith.constant dense<0.000000e+00> : vector<8x256xf32>
    %121 = tpu.matmul %119, %120, %cst_91 {dimension_numbers = #tpu.dot_dimension_numbers<[1], [0], [0], [1], [0, 0, 1, 1], [], []>} : vector<8x8xbf16>, vector<8x256xbf16>, vector<8x256xf32> -> vector<8x256xf32>
    %122 = arith.addf %117, %121 : vector<8x256xf32>
    %c255_i32_92 = arith.constant 255 : i32
    %123 = tpu.dynamic_rotate %82 by %c255_i32_92 dim 1 : vector<8x256xf32>, i32 -> vector<8x256xf32>
    %c5_93 = arith.constant 5 : index
    %c0_94 = arith.constant 0 : index
    %c0_95 = arith.constant 0 : index
    %124 = vector.load %arg6[%c5_93, %c0_94, %c0_95] : memref<9x8x256xf32, #tpu.memory_space<vmem>>, vector<1x8x256xf32>
    %125 = vector.shape_cast %124 : vector<1x8x256xf32> to vector<8x256xf32>
    %126 = arith.mulf %123, %125 : vector<8x256xf32>
    %c5_96 = arith.constant 5 : index
    %c0_97 = arith.constant 0 : index
    %c0_98 = arith.constant 0 : index
    %127 = vector.load %arg4[%c5_96, %c0_97, %c0_98] : memref<9x8x8xbf16, #tpu.memory_space<vmem>>, vector<1x8x8xbf16>
    %128 = vector.shape_cast %127 : vector<1x8x8xbf16> to vector<8x8xbf16>
    %129 = arith.truncf %126 : vector<8x256xf32> to vector<8x256xbf16>
    %cst_99 = arith.constant dense<0.000000e+00> : vector<8x256xf32>
    %130 = tpu.matmul %128, %129, %cst_99 {dimension_numbers = #tpu.dot_dimension_numbers<[1], [0], [0], [1], [0, 0, 1, 1], [], []>} : vector<8x8xbf16>, vector<8x256xbf16>, vector<8x256xf32> -> vector<8x256xf32>
    %131 = arith.addf %122, %130 : vector<8x256xf32>
    %c241_i32_100 = arith.constant 241 : i32
    %132 = tpu.dynamic_rotate %82 by %c241_i32_100 dim 1 : vector<8x256xf32>, i32 -> vector<8x256xf32>
    %c6_101 = arith.constant 6 : index
    %c0_102 = arith.constant 0 : index
    %c0_103 = arith.constant 0 : index
    %133 = vector.load %arg6[%c6_101, %c0_102, %c0_103] : memref<9x8x256xf32, #tpu.memory_space<vmem>>, vector<1x8x256xf32>
    %134 = vector.shape_cast %133 : vector<1x8x256xf32> to vector<8x256xf32>
    %135 = arith.mulf %132, %134 : vector<8x256xf32>
    %c6_104 = arith.constant 6 : index
    %c0_105 = arith.constant 0 : index
    %c0_106 = arith.constant 0 : index
    %136 = vector.load %arg4[%c6_104, %c0_105, %c0_106] : memref<9x8x8xbf16, #tpu.memory_space<vmem>>, vector<1x8x8xbf16>
    %137 = vector.shape_cast %136 : vector<1x8x8xbf16> to vector<8x8xbf16>
    %138 = arith.truncf %135 : vector<8x256xf32> to vector<8x256xbf16>
    %cst_107 = arith.constant dense<0.000000e+00> : vector<8x256xf32>
    %139 = tpu.matmul %137, %138, %cst_107 {dimension_numbers = #tpu.dot_dimension_numbers<[1], [0], [0], [1], [0, 0, 1, 1], [], []>} : vector<8x8xbf16>, vector<8x256xbf16>, vector<8x256xf32> -> vector<8x256xf32>
    %140 = arith.addf %131, %139 : vector<8x256xf32>
    %c240_i32_108 = arith.constant 240 : i32
    %141 = tpu.dynamic_rotate %82 by %c240_i32_108 dim 1 : vector<8x256xf32>, i32 -> vector<8x256xf32>
    %c7_109 = arith.constant 7 : index
    %c0_110 = arith.constant 0 : index
    %c0_111 = arith.constant 0 : index
    %142 = vector.load %arg6[%c7_109, %c0_110, %c0_111] : memref<9x8x256xf32, #tpu.memory_space<vmem>>, vector<1x8x256xf32>
    %143 = vector.shape_cast %142 : vector<1x8x256xf32> to vector<8x256xf32>
    %144 = arith.mulf %141, %143 : vector<8x256xf32>
    %c7_112 = arith.constant 7 : index
    %c0_113 = arith.constant 0 : index
    %c0_114 = arith.constant 0 : index
    %145 = vector.load %arg4[%c7_112, %c0_113, %c0_114] : memref<9x8x8xbf16, #tpu.memory_space<vmem>>, vector<1x8x8xbf16>
    %146 = vector.shape_cast %145 : vector<1x8x8xbf16> to vector<8x8xbf16>
    %147 = arith.truncf %144 : vector<8x256xf32> to vector<8x256xbf16>
    %cst_115 = arith.constant dense<0.000000e+00> : vector<8x256xf32>
    %148 = tpu.matmul %146, %147, %cst_115 {dimension_numbers = #tpu.dot_dimension_numbers<[1], [0], [0], [1], [0, 0, 1, 1], [], []>} : vector<8x8xbf16>, vector<8x256xbf16>, vector<8x256xf32> -> vector<8x256xf32>
    %149 = arith.addf %140, %148 : vector<8x256xf32>
    %c239_i32_116 = arith.constant 239 : i32
    %150 = tpu.dynamic_rotate %82 by %c239_i32_116 dim 1 : vector<8x256xf32>, i32 -> vector<8x256xf32>
    %c8_117 = arith.constant 8 : index
    %c0_118 = arith.constant 0 : index
    %c0_119 = arith.constant 0 : index
    %151 = vector.load %arg6[%c8_117, %c0_118, %c0_119] : memref<9x8x256xf32, #tpu.memory_space<vmem>>, vector<1x8x256xf32>
    %152 = vector.shape_cast %151 : vector<1x8x256xf32> to vector<8x256xf32>
    %153 = arith.mulf %150, %152 : vector<8x256xf32>
    %c8_120 = arith.constant 8 : index
    %c0_121 = arith.constant 0 : index
    %c0_122 = arith.constant 0 : index
    %154 = vector.load %arg4[%c8_120, %c0_121, %c0_122] : memref<9x8x8xbf16, #tpu.memory_space<vmem>>, vector<1x8x8xbf16>
    %155 = vector.shape_cast %154 : vector<1x8x8xbf16> to vector<8x8xbf16>
    %156 = arith.truncf %153 : vector<8x256xf32> to vector<8x256xbf16>
    %cst_123 = arith.constant dense<0.000000e+00> : vector<8x256xf32>
    %157 = tpu.matmul %155, %156, %cst_123 {dimension_numbers = #tpu.dot_dimension_numbers<[1], [0], [0], [1], [0, 0, 1, 1], [], []>} : vector<8x8xbf16>, vector<8x256xbf16>, vector<8x256xf32> -> vector<8x256xf32>
    %158 = arith.addf %149, %157 : vector<8x256xf32>
    %c0_124 = arith.constant 0 : index
    %c0_125 = arith.constant 0 : index
    %159 = vector.load %arg5[%c0_124, %c0_125] : memref<8x1xf32, #tpu.memory_space<vmem>>, vector<8x1xf32>
    %160 = vector.broadcast %159 : vector<8x1xf32> to vector<8x256xf32>
    %161 = arith.addf %158, %160 : vector<8x256xf32>
    %162 = arith.addf %161, %1 : vector<8x256xf32>
    %cst_126 = arith.constant 0.000000e+00 : f32
    %163 = vector.broadcast %cst_126 : f32 to vector<8x256xf32>
    %164 = arith.maximumf %162, %163 : vector<8x256xf32>
    %165 = vector.shape_cast %164 : vector<8x256xf32> to vector<1x8x256xf32>
    %c0_127 = arith.constant 0 : index
    %c0_128 = arith.constant 0 : index
    %c0_129 = arith.constant 0 : index
    %166 = vector.load %arg7[%c0_127, %c0_128, %c0_129] : memref<1x8x256xf32, #tpu.memory_space<vmem>>, vector<1x8x256xf32>
    tpu.vector_store %arg7[%c0_127, %c0_128, %c0_129], %165 {strides = array<i32>} : memref<1x8x256xf32, #tpu.memory_space<vmem>>, vector<1x8x256xf32>,
    return
  }
  func.func @transform_0(%arg0: i32) -> (i32, i32, i32) {
    %c0_i32 = arith.constant 0 : i32
    %c0_i32_0 = arith.constant 0 : i32
    %c0_i32_1 = arith.constant 0 : i32
    return %arg0, %c0_i32, %c0_i32_0 : i32, i32, i32
  }
  func.func @transform_1(%arg0: i32) -> (i32, i32, i32) {
    %c0_i32 = arith.constant 0 : i32
    %c0_i32_0 = arith.constant 0 : i32
    %c0_i32_1 = arith.constant 0 : i32
    %c0_i32_2 = arith.constant 0 : i32
    return %c0_i32, %c0_i32_0, %c0_i32_1 : i32, i32, i32
  }
  func.func @transform_2(%arg0: i32) -> (i32, i32) {
    %c0_i32 = arith.constant 0 : i32
    %c0_i32_0 = arith.constant 0 : i32
    %c0_i32_1 = arith.constant 0 : i32
    return %c0_i32, %c0_i32_0 : i32, i32
  }
  func.func @transform_3(%arg0: i32) -> (i32, i32, i32) {
    %c0_i32 = arith.constant 0 : i32
    %c0_i32_0 = arith.constant 0 : i32
    %c0_i32_1 = arith.constant 0 : i32
    %c0_i32_2 = arith.constant 0 : i32
    return %c0_i32, %c0_i32_0, %c0_i32_1 : i32, i32, i32
  }
  func.func @transform_4(%arg0: i32) -> (i32, i32) {
    %c0_i32 = arith.constant 0 : i32
    %c0_i32_0 = arith.constant 0 : i32
    %c0_i32_1 = arith.constant 0 : i32
    return %c0_i32, %c0_i32_0 : i32, i32
  }
  func.func @transform_5(%arg0: i32) -> (i32, i32, i32) {
    %c0_i32 = arith.constant 0 : i32
    %c0_i32_0 = arith.constant 0 : i32
    %c0_i32_1 = arith.constant 0 : i32
    %c0_i32_2 = arith.constant 0 : i32
    return %c0_i32, %c0_i32_0, %c0_i32_1 : i32, i32, i32
  }
  func.func @transform_6(%arg0: i32) -> (i32, i32, i32) {
    %c0_i32 = arith.constant 0 : i32
    %c0_i32_0 = arith.constant 0 : i32
    %c0_i32_1 = arith.constant 0 : i32
    return %arg0, %c0_i32, %c0_i32_0 : i32, i32, i32
  }
}

</mosaic_0001>

<llo_original>
// kernel: tpu_custom_call.1
$region0: #{tpu_custom_call.1}
  #allocation0 [shape = 'u32[]', space=smem, size = 0x4, offset = 0x4, fixed_abs, tag = 'smem constant byte address 0x4 - core index']
  #allocation1 [shape = 'u32[144,128]{1,0:T(1,128)}', space=vmem, size = 0x12000, scoped, tag = 'internal scratch']
  %s0 = inlined_call_operand.hbm [shape: f32[2,8,256], index: 0, kind: input, shape index: {}]
  %s1 = inlined_call_operand.vmem [shape: bf16[9,8,8], index: 1, kind: input, shape index: {}]
  %s2 = inlined_call_operand.vmem [shape: f32[8,1], index: 2, kind: input, shape index: {}]
  %s3 = inlined_call_operand.vmem [shape: bf16[9,8,8], index: 3, kind: input, shape index: {}]
  %s4 = inlined_call_operand.vmem [shape: f32[8,1], index: 4, kind: input, shape index: {}]
  %s5 = inlined_call_operand.vmem [shape: f32[9,8,256], index: 5, kind: input, shape index: {}]
  %s6 = inlined_call_operand.hbm [shape: f32[2,8,256], index: 6, kind: output, shape index: {}]
  %s7 = sld [smem:[#allocation0]]
  $region61: #{tpu_custom_call.1} parent=0
    _
  %s9 = ssub.s32 1, %s7
  %s10 = scalar_select 0, %s9, %s7
  $region1: #{tpu_custom_call.1} parent=0
    #allocation2 [shape = 'u8[16384]{0}', space=vmem, size = 0x4000, scoped, tag = 'input window, operand 0']
    #allocation3 [shape = 's32[2]{0}', space=sflag, size = 0x8, scoped, tag = 'scoped memory for tpu_custom_call.1']
    #allocation4 [shape = 's32[2]{0}', space=sflag, size = 0x8, scoped, tag = 'scoped memory for tpu_custom_call.1']
    #allocation5 [shape = 'u8[16384]{0}', space=vmem, size = 0x4000, scoped, tag = 'output window, operand 0']
    %11 = vsyncpa [#allocation3], 0
    %s12 = scalar_lea.sflag [#allocation3], 1
    %13 = vsyncpa %s12, 0
    %14 = vsyncpa [#allocation4], 0
    %s15 = scalar_lea.sflag [#allocation4], 1
    %16 = vsyncpa %s15, 0
    loop: start=0, step=1, limit=4
    $region2: #{tpu_custom_call.1} parent=1 // loop_pre_header
      _
    $region3: #{tpu_custom_call.1} parent=1 // loop_header
      %s18 = sphi 0, %s22
      %p19 = scmp.ge.s32.totalorder %s18, 4
      %s28 = sphi 0, %s30
      %s31 = sphi 0, %s28
      %s32 = sphi 0, %s31
      %s48 = sphi 0, %s32
      %s52 = sphi 0, %s52
      %s54 = sphi 0, %s52
      %s55 = sphi 0, %s54
      %s69 = sphi 0, %s55
      %s73 = sphi 0, %s73
      %s75 = sphi 0, %s73
      %s76 = sphi 0, %s75
      %s90 = sphi 0, %s76
      %s94 = sphi 0, %s94
      %s96 = sphi 0, %s94
      %s97 = sphi 0, %s96
      %s111 = sphi 0, %s97
      %s115 = sphi 0, %s115
      %s117 = sphi 0, %s115
      %s118 = sphi 0, %s117
      %s132 = sphi 0, %s118
      %s136 = sphi 0, %s136
      %s138 = sphi 0, %s136
      %s139 = sphi 0, %s138
      %s153 = sphi 0, %s139
      %s159 = sphi 0, %s161
      %s162 = sphi 0, %s159
      %s163 = sphi 0, %s162
      %s179 = sphi 0, %s163
    $region4: #{tpu_custom_call.1} parent=1 // loop_header_branch
      %21 = sbr.rel (%p19) target = $region8
    $region5: #{tpu_custom_call.1} parent=1 // loop_body
      %s23 = ssub.s32 %s18, 1
      %s24 = ssub.s32 %s18, 2
      %s25 = sadd.s32 %s18, 1
      %s26 = ssub.s32 %s18, %s25
      %p27 = scmp.eq.s32.totalorder %s26, 0
      %s29 = sadd.s32 %s28, 1
      %s30 = scalar_select %p27, %s28, %s29
      %p33 = pneg %p27
      %p34 = scmp.eq.s32.totalorder %s18, 1
      %p35 = por %p33, %p34
      %p36 = scmp.ne.s32.totalorder %s28, %s31
      %p37 = scmp.eq.s32.totalorder %s18, 0
      %p38 = por %p36, %p37
      %p39 = scmp.ne.s32.totalorder %s28, %s31
      %p40 = scmp.eq.s32.totalorder %s23, 1
      %p41 = por %p39, %p40
      %p42 = scmp.ne.s32.totalorder %s31, %s32
      %p43 = scmp.eq.s32.totalorder %s23, 0
      %p44 = por %p42, %p43
      %p45 = scmp.ne.s32.totalorder %s31, %s32
      %p46 = scmp.eq.s32.totalorder %s24, 1
      %p47 = por %p45, %p46
      %p49 = scmp.ne.s32.totalorder %s32, %s48
      %p50 = scmp.eq.s32.totalorder %s24, 0
      %p51 = por %p49, %p50
      %s53 = sadd.s32 %s52, 1
      %p56 = scmp.eq.s32.totalorder %s18, 1
      %p57 = scmp.ne.s32.totalorder %s52, %s54
      %p58 = scmp.eq.s32.totalorder %s18, 0
      %p59 = por %p57, %p58
      %p60 = scmp.ne.s32.totalorder %s52, %s54
      %p61 = scmp.eq.s32.totalorder %s23, 1
      %p62 = por %p60, %p61
      %p63 = scmp.ne.s32.totalorder %s54, %s55
      %p64 = scmp.eq.s32.totalorder %s23, 0
      %p65 = por %p63, %p64
      %p66 = scmp.ne.s32.totalorder %s54, %s55
      %p67 = scmp.eq.s32.totalorder %s24, 1
      %p68 = por %p66, %p67
      %p70 = scmp.ne.s32.totalorder %s55, %s69
      %p71 = scmp.eq.s32.totalorder %s24, 0
      %p72 = por %p70, %p71
      %s74 = sadd.s32 %s73, 1
      %p77 = scmp.eq.s32.totalorder %s18, 1
      %p78 = scmp.ne.s32.totalorder %s73, %s75
      %p79 = scmp.eq.s32.totalorder %s18, 0
      %p80 = por %p78, %p79
      %p81 = scmp.ne.s32.totalorder %s73, %s75
      %p82 = scmp.eq.s32.totalorder %s23, 1
      %p83 = por %p81, %p82
      %p84 = scmp.ne.s32.totalorder %s75, %s76
      %p85 = scmp.eq.s32.totalorder %s23, 0
      %p86 = por %p84, %p85
      %p87 = scmp.ne.s32.totalorder %s75, %s76
      %p88 = scmp.eq.s32.totalorder %s24, 1
      %p89 = por %p87, %p88
      %p91 = scmp.ne.s32.totalorder %s76, %s90
      %p92 = scmp.eq.s32.totalorder %s24, 0
      %p93 = por %p91, %p92
      %s95 = sadd.s32 %s94, 1
      %p98 = scmp.eq.s32.totalorder %s18, 1
      %p99 = scmp.ne.s32.totalorder %s94, %s96
      %p100 = scmp.eq.s32.totalorder %s18, 0
      %p101 = por %p99, %p100
      %p102 = scmp.ne.s32.totalorder %s94, %s96
      %p103 = scmp.eq.s32.totalorder %s23, 1
      %p104 = por %p102, %p103
      %p105 = scmp.ne.s32.totalorder %s96, %s97
      %p106 = scmp.eq.s32.totalorder %s23, 0
      %p107 = por %p105, %p106
      %p108 = scmp.ne.s32.totalorder %s96, %s97
      %p109 = scmp.eq.s32.totalorder %s24, 1
      %p110 = por %p108, %p109
      %p112 = scmp.ne.s32.totalorder %s97, %s111
      %p113 = scmp.eq.s32.totalorder %s24, 0
      %p114 = por %p112, %p113
      %s116 = sadd.s32 %s115, 1
      %p119 = scmp.eq.s32.totalorder %s18, 1
      %p120 = scmp.ne.s32.totalorder %s115, %s117
      %p121 = scmp.eq.s32.totalorder %s18, 0
      %p122 = por %p120, %p121
      %p123 = scmp.ne.s32.totalorder %s115, %s117
      %p124 = scmp.eq.s32.totalorder %s23, 1
      %p125 = por %p123, %p124
      %p126 = scmp.ne.s32.totalorder %s117, %s118
      %p127 = scmp.eq.s32.totalorder %s23, 0
      %p128 = por %p126, %p127
      %p129 = scmp.ne.s32.totalorder %s117, %s118
      %p130 = scmp.eq.s32.totalorder %s24, 1
      %p131 = por %p129, %p130
      %p133 = scmp.ne.s32.totalorder %s118, %s132
      %p134 = scmp.eq.s32.totalorder %s24, 0
      %p135 = por %p133, %p134
      %s137 = sadd.s32 %s136, 1
      %p140 = scmp.eq.s32.totalorder %s18, 1
      %p141 = scmp.ne.s32.totalorder %s136, %s138
      %p142 = scmp.eq.s32.totalorder %s18, 0
      %p143 = por %p141, %p142
      %p144 = scmp.ne.s32.totalorder %s136, %s138
      %p145 = scmp.eq.s32.totalorder %s23, 1
      %p146 = por %p144, %p145
      %p147 = scmp.ne.s32.totalorder %s138, %s139
      %p148 = scmp.eq.s32.totalorder %s23, 0
      %p149 = por %p147, %p148
      %p150 = scmp.ne.s32.totalorder %s138, %s139
      %p151 = scmp.eq.s32.totalorder %s24, 1
      %p152 = por %p150, %p151
      %p154 = scmp.ne.s32.totalorder %s139, %s153
      %p155 = scmp.eq.s32.totalorder %s24, 0
      %p156 = por %p154, %p155
      %s157 = ssub.s32 %s18, %s25
      %p158 = scmp.eq.s32.totalorder %s157, 0
      %s160 = sadd.s32 %s159, 1
      %s161 = scalar_select %p158, %s159, %s160
      %p164 = pneg %p158
      %p165 = scmp.eq.s32.totalorder %s18, 1
      %p166 = por %p164, %p165
      %p167 = scmp.ne.s32.totalorder %s159, %s162
      %p168 = scmp.eq.s32.totalorder %s18, 0
      %p169 = por %p167, %p168
      %p170 = scmp.ne.s32.totalorder %s159, %s162
      %p171 = scmp.eq.s32.totalorder %s23, 1
      %p172 = por %p170, %p171
      %p173 = scmp.ne.s32.totalorder %s162, %s163
      %p174 = scmp.eq.s32.totalorder %s23, 0
      %p175 = por %p173, %p174
      %p176 = scmp.ne.s32.totalorder %s162, %s163
      %p177 = scmp.eq.s32.totalorder %s24, 1
      %p178 = por %p176, %p177
      %p180 = scmp.ne.s32.totalorder %s163, %s179
      %p181 = scmp.eq.s32.totalorder %s24, 0
      %p182 = por %p180, %p181
      %p183 = scmp.le.s32.totalorder 1, %s18
      %p184 = scmp.lt.s32.totalorder %s18, 3
      %p185 = pnand %p183, %p184
      %p186 = pneg %p185
      // Predicated region
      $region9: #{tpu_custom_call.1} parent=5 // pred_check
        _
      $region10: #{tpu_custom_call.1} parent=5 // pred_check_branch
        %188 = sbr.rel (%p185) target = $region12
      $region11: #{tpu_custom_call.1} parent=5 // pred_region
        %s189 = ssub.s32 %s18, 1
        // Predicated region
        $region13: #{tpu_custom_call.1} parent=11 // pred_check
          %p190 = pneg %p65
        $region14: #{tpu_custom_call.1} parent=11 // pred_check_branch
          %192 = sbr.rel (%p190) target = $region16
        $region15: #{tpu_custom_call.1} parent=11 // pred_region
          _
        $region16: #{tpu_custom_call.1} parent=11 // pred_fallthru
          _
        // Predicated region
        $region17: #{tpu_custom_call.1} parent=11 // pred_check
          %p193 = pneg %p86
        $region18: #{tpu_custom_call.1} parent=11 // pred_check_branch
          %195 = sbr.rel (%p193) target = $region20
        $region19: #{tpu_custom_call.1} parent=11 // pred_region
          _
        $region20: #{tpu_custom_call.1} parent=11 // pred_fallthru
          _
        // Predicated region
        $region21: #{tpu_custom_call.1} parent=11 // pred_check
          %p196 = pneg %p107
        $region22: #{tpu_custom_call.1} parent=11 // pred_check_branch
          %198 = sbr.rel (%p196) target = $region24
        $region23: #{tpu_custom_call.1} parent=11 // pred_region
          _
        $region24: #{tpu_custom_call.1} parent=11 // pred_fallthru
          _
        // Predicated region
        $region25: #{tpu_custom_call.1} parent=11 // pred_check
          %p199 = pneg %p128
        $region26: #{tpu_custom_call.1} parent=11 // pred_check_branch
          %201 = sbr.rel (%p199) target = $region28
        $region27: #{tpu_custom_call.1} parent=11 // pred_region
          _
        $region28: #{tpu_custom_call.1} parent=11 // pred_fallthru
          _
        // Predicated region
        $region29: #{tpu_custom_call.1} parent=11 // pred_check
          %p202 = pneg %p149
        $region30: #{tpu_custom_call.1} parent=11 // pred_check_branch
          %204 = sbr.rel (%p202) target = $region32
        $region31: #{tpu_custom_call.1} parent=11 // pred_region
          _
        $region32: #{tpu_custom_call.1} parent=11 // pred_fallthru
          _
      $region12: #{tpu_custom_call.1} parent=5 // pred_fallthru
        _
      %p205 = scmp.lt.s32.totalorder %s18, 2
      // Predicated region
      $region33: #{tpu_custom_call.1} parent=5 // pred_check
        %p206 = pneg %p205
      $region34: #{tpu_custom_call.1} parent=5 // pred_check_branch
        %208 = sbr.rel (%p206) target = $region36
      $region35: #{tpu_custom_call.1} parent=5 // pred_region
        // Predicated region
        $region37: #{tpu_custom_call.1} parent=35 // pred_check
          %p209 = pneg %p38
        $region38: #{tpu_custom_call.1} parent=35 // pred_check_branch
          %211 = sbr.rel (%p209) target = $region40
        $region39: #{tpu_custom_call.1} parent=35 // pred_region
          %s212 = sand.u32 %s28, 1
          %s213 = scalar_lea.sflag [#allocation3], %s212
          %s214 = sand.u32 %s28, 1
          %s215 = smul.addr %s214, 16
          %s216 = scalar_lea.vmem [#allocation2], %s215
          %s218 = ssub.s32 256, 256
          %219 = vsyncadd %s213, %s218
          %s220 = smul.addr %s18, 2
          %s221 = smul.addr %s220, 128
          %s222 = scalar_lea.hbm %s0, %s221
          %s224 = sshll.u32 %s216, 4
          %s225 = int_to_ptr.vmem [resolvable:$true] %s224
          %227 = dma.hbm_to_vmem [thread:$0]  %s222, 256, %s225, %s213
        $region40: #{tpu_custom_call.1} parent=35 // pred_fallthru
          _
      $region36: #{tpu_custom_call.1} parent=5 // pred_fallthru
        _
      %p228 = scmp.le.s32.totalorder 1, %s18
      %p229 = scmp.lt.s32.totalorder %s18, 3
      %p230 = pnand %p228, %p229
      %p231 = pneg %p230
      // Predicated region
      $region41: #{tpu_custom_call.1} parent=5 // pred_check
        _
      $region42: #{tpu_custom_call.1} parent=5 // pred_check_branch
        %233 = sbr.rel (%p230) target = $region44
      $region43: #{tpu_custom_call.1} parent=5 // pred_region
        %s234 = ssub.s32 %s18, 1
        %s235 = sand.u32 %s31, 1
        %s236 = scalar_lea.sflag [#allocation3], %s235
        %s237 = sand.u32 %s31, 1
        %s238 = smul.addr %s237, 16
        %s239 = scalar_lea.vmem [#allocation2], %s238
        // Predicated region
        $region45: #{tpu_custom_call.1} parent=43 // pred_check
          %p240 = pneg %p44
        $region46: #{tpu_custom_call.1} parent=43 // pred_check_branch
          %242 = sbr.rel (%p240) target = $region48
        $region47: #{tpu_custom_call.1} parent=43 // pred_region
          %243 = dma.done %s236, 256
        $region48: #{tpu_custom_call.1} parent=43 // pred_fallthru
          _
        %s244 = sand.u32 %s31, 1
        %s245 = scalar_lea.sflag [#allocation3], %s244
        %s246 = sand.u32 %s31, 1
        %s247 = smul.addr %s246, 16
        %s248 = scalar_lea.vmem [#allocation2], %s247
        %p249 = pneg %p44
        %p250 = pneg %p41
        %p251 = pneg %p65
        %p252 = pneg %p62
        %p253 = pneg %p86
        %p254 = pneg %p83
        %p255 = pneg %p107
        %p256 = pneg %p104
        %p257 = pneg %p128
        %p258 = pneg %p125
        %p259 = pneg %p149
        %p260 = pneg %p146
        %p261 = pneg %p175
        %p262 = pneg %p172
        %s263 = sand.u32 %s162, 1
        %s264 = scalar_lea.sflag [#allocation4], %s263
        %s265 = sand.u32 %s162, 1
        %s266 = smul.addr %s265, 16
        %s267 = scalar_lea.vmem [#allocation5], %s266
        %v269 = vld [vmem:[%s239] sm:$0xff]
        %v270 = vld [vmem:[%s239 + $0x8] sm:$0xff]
        %271 = vrot.lane.b32.xlu0 %v269, 17
        %v272 = vpop.permute.xlu0 %271
        %273 = vrot.lane.b32.xlu0 %v270, 17
        %v274 = vpop.permute.xlu0 %273
        %v275 = vlaneseq
        %v276 = vand.u32 %v275, 127
        %vm277 = vcmp.lt.s32.totalorder %v276, 17
        %v278 = vsel %vm277, %v272, %v274
        %v279 = vsel %vm277, %v274, %v272
        %v280 = vld [vmem:[%s5] sm:$0xff]
        %v281 = vld [vmem:[%s5 + $0x8] sm:$0xff]
        %v282 = vmul.f32 %v279, %v280
        %v283 = vmul.f32 %v278, %v281
        %v284 = vld [vmem:[%s1] sm:$0xf]
        %v285 = vpack.c.bf16 %v282, %v282
        %v286 = vpack.c.bf16 %v283, %v283
        %287 = vrot.lane.b32.xlu0 %v269, 16
        %v288 = vpop.permute.xlu0 %287
        %289 = vrot.lane.b32.xlu0 %v270, 16
        %v290 = vpop.permute.xlu0 %289
        %vm291 = vcmp.lt.s32.totalorder %v276, 16
        %v292 = vsel %vm291, %v288, %v290
        %v293 = vsel %vm291, %v290, %v288
        %s294 = scalar_lea.vmem %s5, 16
        %v295 = vld [vmem:[%s294] sm:$0xff]
        %v296 = vld [vmem:[%s294 + $0x8] sm:$0xff]
        %v297 = vmul.f32 %v293, %v295
        %v298 = vmul.f32 %v292, %v296
        %s299 = scalar_lea.vmem %s1, 4
        %v300 = vld [vmem:[%s299] sm:$0xf]
        %v301 = vpack.c.bf16 %v297, %v297
        %v302 = vpack.c.bf16 %v298, %v298
        %vm303 = vcmask 64512
        %v305 = vsel %vm303, %v300, 0
        %vm307 = vcmask 1043456
        %v309 = vsel %vm307, %v301, 0
        %v312 = vsel %vm307, %v302, 0
        %314 = vmatprep.subr.bf16.mxu0 %v312
        %315 = vmatpush1.bf16.msra.mxu0 %v309
        %316 = vmatprep.subr.bf16.mxu0 0
        %317 = vmatpush1.bf16.msra.mxu0 0
        %318 = vmatprep.subr.bf16.mxu0 0
        %319 = vmatpush1.bf16.msra.mxu0 0
        %320 = vmatprep.subr.bf16.mxu0 0
        %321 = vmatpush1.bf16.msra.mxu0 0
        %322 = vmatprep.subr.bf16.mxu0 0
        %323 = vmatpush1.bf16.msra.mxu0 0
        %324 = vmatprep.subr.bf16.mxu0 0
        %325 = vmatpush1.bf16.msra.mxu0 0
        %326 = vmatprep.subr.bf16.mxu0 0
        %327 = vmatpush1.bf16.msra.mxu0 0
        %328 = vmatprep.subr.bf16.mxu0 0
        %329 = vmatpush1.bf16.msra.mxu0 0
        %330 = vmatprep.subr.bf16.mxu0 0
        %331 = vmatpush1.bf16.msra.mxu0 0
        %332 = vmatprep.subr.bf16.mxu0 0
        %333 = vmatpush1.bf16.msra.mxu0 0
        %334 = vmatprep.subr.bf16.mxu0 0
        %335 = vmatpush1.bf16.msra.mxu0 0
        %336 = vmatprep.subr.bf16.mxu0 0
        %337 = vmatpush1.bf16.msra.mxu0 0
        %338 = vmatprep.subr.bf16.mxu0 0
        %339 = vmatpush1.bf16.msra.mxu0 0
        %340 = vmatprep.subr.bf16.mxu0 0
        %341 = vmatpush1.bf16.msra.mxu0 0
        %342 = vmatprep.subr.bf16.mxu0 0
        %343 = vmatpush1.bf16.msra.mxu0 0
        %344 = vmatprep.subr.bf16.mxu0 0
        %345 = vmatpush1.bf16.msra.mxu0 0
        %346 = vmatprep.mubr.bf16.mxu0 0
        %347 = vmatmul.mubr.bf16.gmra.mrb[0].mxu0 %v305
        %v348 = vpop.f32.mrb[0].mxu0
        %v349 = vadd.f32 0.0, %v348
        %v350 = vpop.f32.mrb[0].mxu0
        %v351 = vadd.f32 0.0, %v350
        %v352 = vpop.f32.mrb[0].mxu0
        %v353 = vpop.f32.mrb[0].mxu0
        %354 = vdwg.mxu0
        %v356 = vsel %vm303, %v284, 0
        %v359 = vsel %vm307, %v285, 0
        %v362 = vsel %vm307, %v286, 0
        %364 = vmatprep.subr.bf16.mxu0 %v362
        %365 = vmatpush1.bf16.msra.mxu0 %v359
        %366 = vmatprep.subr.bf16.mxu0 0
        %367 = vmatpush1.bf16.msra.mxu0 0
        %368 = vmatprep.subr.bf16.mxu0 0
        %369 = vmatpush1.bf16.msra.mxu0 0
        %370 = vmatprep.subr.bf16.mxu0 0
        %371 = vmatpush1.bf16.msra.mxu0 0
        %372 = vmatprep.subr.bf16.mxu0 0
        %373 = vmatpush1.bf16.msra.mxu0 0
        %374 = vmatprep.subr.bf16.mxu0 0
        %375 = vmatpush1.bf16.msra.mxu0 0
        %376 = vmatprep.subr.bf16.mxu0 0
        %377 = vmatpush1.bf16.msra.mxu0 0
        %378 = vmatprep.subr.bf16.mxu0 0
        %379 = vmatpush1.bf16.msra.mxu0 0
        %380 = vmatprep.subr.bf16.mxu0 0
        %381 = vmatpush1.bf16.msra.mxu0 0
        %382 = vmatprep.subr.bf16.mxu0 0
        %383 = vmatpush1.bf16.msra.mxu0 0
        %384 = vmatprep.subr.bf16.mxu0 0
        %385 = vmatpush1.bf16.msra.mxu0 0
        %386 = vmatprep.subr.bf16.mxu0 0
        %387 = vmatpush1.bf16.msra.mxu0 0
        %388 = vmatprep.subr.bf16.mxu0 0
        %389 = vmatpush1.bf16.msra.mxu0 0
        %390 = vmatprep.subr.bf16.mxu0 0
        %391 = vmatpush1.bf16.msra.mxu0 0
        %392 = vmatprep.subr.bf16.mxu0 0
        %393 = vmatpush1.bf16.msra.mxu0 0
        %394 = vmatprep.subr.bf16.mxu0 0
        %395 = vmatpush1.bf16.msra.mxu0 0
        %396 = vmatprep.mubr.bf16.mxu0 0
        %397 = vmatmul.mubr.bf16.gmra.mrb[0].mxu0 %v356
        %v398 = vpop.f32.mrb[0].mxu0
        %v399 = vadd.f32 %v349, %v398
        %v400 = vpop.f32.mrb[0].mxu0
        %v401 = vadd.f32 %v351, %v400
        %v402 = vpop.f32.mrb[0].mxu0
        %v403 = vpop.f32.mrb[0].mxu0
        %404 = vdwg.mxu0
        %405 = vrot.lane.b32.xlu0 %v269, 15
        %v406 = vpop.permute.xlu0 %405
        %407 = vrot.lane.b32.xlu0 %v270, 15
        %v408 = vpop.permute.xlu0 %407
        %vm409 = vcmp.lt.s32.totalorder %v276, 15
        %v410 = vsel %vm409, %v406, %v408
        %v411 = vsel %vm409, %v408, %v406
        %s412 = scalar_lea.vmem %s5, 32
        %v413 = vld [vmem:[%s412] sm:$0xff]
        %v414 = vld [vmem:[%s412 + $0x8] sm:$0xff]
        %v415 = vmul.f32 %v411, %v413
        %v416 = vmul.f32 %v410, %v414
        %s417 = scalar_lea.vmem %s1, 8
        %v418 = vld [vmem:[%s417] sm:$0xf]
        %v419 = vpack.c.bf16 %v415, %v415
        %v420 = vpack.c.bf16 %v416, %v416
        %v422 = vsel %vm303, %v418, 0
        %v425 = vsel %vm307, %v419, 0
        %v428 = vsel %vm307, %v420, 0
        %430 = vmatprep.subr.bf16.mxu0 %v428
        %431 = vmatpush1.bf16.msra.mxu0 %v425
        %432 = vmatprep.subr.bf16.mxu0 0
        %433 = vmatpush1.bf16.msra.mxu0 0
        %434 = vmatprep.subr.bf16.mxu0 0
        %435 = vmatpush1.bf16.msra.mxu0 0
        %436 = vmatprep.subr.bf16.mxu0 0
        %437 = vmatpush1.bf16.msra.mxu0 0
        %438 = vmatprep.subr.bf16.mxu0 0
        %439 = vmatpush1.bf16.msra.mxu0 0
        %440 = vmatprep.subr.bf16.mxu0 0
        %441 = vmatpush1.bf16.msra.mxu0 0
        %442 = vmatprep.subr.bf16.mxu0 0
        %443 = vmatpush1.bf16.msra.mxu0 0
        %444 = vmatprep.subr.bf16.mxu0 0
        %445 = vmatpush1.bf16.msra.mxu0 0
        %446 = vmatprep.subr.bf16.mxu0 0
        %447 = vmatpush1.bf16.msra.mxu0 0
        %448 = vmatprep.subr.bf16.mxu0 0
        %449 = vmatpush1.bf16.msra.mxu0 0
        %450 = vmatprep.subr.bf16.mxu0 0
        %451 = vmatpush1.bf16.msra.mxu0 0
        %452 = vmatprep.subr.bf16.mxu0 0
        %453 = vmatpush1.bf16.msra.mxu0 0
        %454 = vmatprep.subr.bf16.mxu0 0
        %455 = vmatpush1.bf16.msra.mxu0 0
        %456 = vmatprep.subr.bf16.mxu0 0
        %457 = vmatpush1.bf16.msra.mxu0 0
        %458 = vmatprep.subr.bf16.mxu0 0
        %459 = vmatpush1.bf16.msra.mxu0 0
        %460 = vmatprep.subr.bf16.mxu0 0
        %461 = vmatpush1.bf16.msra.mxu0 0
        %462 = vmatprep.mubr.bf16.mxu0 0
        %463 = vmatmul.mubr.bf16.gmra.mrb[0].mxu0 %v422
        %v464 = vpop.f32.mrb[0].mxu0
        %v465 = vadd.f32 0.0, %v464
        %v466 = vpop.f32.mrb[0].mxu0
        %v467 = vadd.f32 0.0, %v466
        %v468 = vpop.f32.mrb[0].mxu0
        %v469 = vpop.f32.mrb[0].mxu0
        %470 = vdwg.mxu0
        %v471 = vadd.f32 %v399, %v465
        %v472 = vadd.f32 %v401, %v467
        %473 = vrot.lane.b32.xlu0 %v269, 1
        %v474 = vpop.permute.xlu0 %473
        %475 = vrot.lane.b32.xlu0 %v270, 1
        %v476 = vpop.permute.xlu0 %475
        %vm477 = vcmp.lt.s32.totalorder %v276, 1
        %v478 = vsel %vm477, %v474, %v476
        %v479 = vsel %vm477, %v476, %v474
        %s480 = scalar_lea.vmem %s5, 48
        %v481 = vld [vmem:[%s480] sm:$0xff]
        %v482 = vld [vmem:[%s480 + $0x8] sm:$0xff]
        %v483 = vmul.f32 %v479, %v481
        %v484 = vmul.f32 %v478, %v482
        %s485 = scalar_lea.vmem %s1, 12
        %v486 = vld [vmem:[%s485] sm:$0xf]
        %v487 = vpack.c.bf16 %v483, %v483
        %v488 = vpack.c.bf16 %v484, %v484
        %v490 = vsel %vm303, %v486, 0
        %v493 = vsel %vm307, %v487, 0
        %v496 = vsel %vm307, %v488, 0
        %498 = vmatprep.subr.bf16.mxu0 %v496
        %499 = vmatpush1.bf16.msra.mxu0 %v493
        %500 = vmatprep.subr.bf16.mxu0 0
        %501 = vmatpush1.bf16.msra.mxu0 0
        %502 = vmatprep.subr.bf16.mxu0 0
        %503 = vmatpush1.bf16.msra.mxu0 0
        %504 = vmatprep.subr.bf16.mxu0 0
        %505 = vmatpush1.bf16.msra.mxu0 0
        %506 = vmatprep.subr.bf16.mxu0 0
        %507 = vmatpush1.bf16.msra.mxu0 0
        %508 = vmatprep.subr.bf16.mxu0 0
        %509 = vmatpush1.bf16.msra.mxu0 0
        %510 = vmatprep.subr.bf16.mxu0 0
        %511 = vmatpush1.bf16.msra.mxu0 0
        %512 = vmatprep.subr.bf16.mxu0 0
        %513 = vmatpush1.bf16.msra.mxu0 0
        %514 = vmatprep.subr.bf16.mxu0 0
        %515 = vmatpush1.bf16.msra.mxu0 0
        %516 = vmatprep.subr.bf16.mxu0 0
        %517 = vmatpush1.bf16.msra.mxu0 0
        %518 = vmatprep.subr.bf16.mxu0 0
        %519 = vmatpush1.bf16.msra.mxu0 0
        %520 = vmatprep.subr.bf16.mxu0 0
        %521 = vmatpush1.bf16.msra.mxu0 0
        %522 = vmatprep.subr.bf16.mxu0 0
        %523 = vmatpush1.bf16.msra.mxu0 0
        %524 = vmatprep.subr.bf16.mxu0 0
        %525 = vmatpush1.bf16.msra.mxu0 0
        %526 = vmatprep.subr.bf16.mxu0 0
        %527 = vmatpush1.bf16.msra.mxu0 0
        %528 = vmatprep.subr.bf16.mxu0 0
        %529 = vmatpush1.bf16.msra.mxu0 0
        %530 = vmatprep.mubr.bf16.mxu0 0
        %531 = vmatmul.mubr.bf16.gmra.mrb[0].mxu0 %v490
        %v532 = vpop.f32.mrb[0].mxu0
        %v533 = vadd.f32 0.0, %v532
        %v534 = vpop.f32.mrb[0].mxu0
        %v535 = vadd.f32 0.0, %v534
        %v536 = vpop.f32.mrb[0].mxu0
        %v537 = vpop.f32.mrb[0].mxu0
        %538 = vdwg.mxu0
        %v539 = vadd.f32 %v471, %v533
        %v540 = vadd.f32 %v472, %v535
        %s541 = scalar_lea.vmem %s1, 16
        %v542 = vld [vmem:[%s541] sm:$0xf]
        %v543 = vpack.c.bf16 %v269, %v269
        %v544 = vpack.c.bf16 %v270, %v270
        %v546 = vsel %vm303, %v542, 0
        %v549 = vsel %vm307, %v543, 0
        %v552 = vsel %vm307, %v544, 0
        %554 = vmatprep.subr.bf16.mxu0 %v552
        %555 = vmatpush1.bf16.msra.mxu0 %v549
        %556 = vmatprep.subr.bf16.mxu0 0
        %557 = vmatpush1.bf16.msra.mxu0 0
        %558 = vmatprep.subr.bf16.mxu0 0
        %559 = vmatpush1.bf16.msra.mxu0 0
        %560 = vmatprep.subr.bf16.mxu0 0
        %561 = vmatpush1.bf16.msra.mxu0 0
        %562 = vmatprep.subr.bf16.mxu0 0
        %563 = vmatpush1.bf16.msra.mxu0 0
        %564 = vmatprep.subr.bf16.mxu0 0
        %565 = vmatpush1.bf16.msra.mxu0 0
        %566 = vmatprep.subr.bf16.mxu0 0
        %567 = vmatpush1.bf16.msra.mxu0 0
        %568 = vmatprep.subr.bf16.mxu0 0
        %569 = vmatpush1.bf16.msra.mxu0 0
        %570 = vmatprep.subr.bf16.mxu0 0
        %571 = vmatpush1.bf16.msra.mxu0 0
        %572 = vmatprep.subr.bf16.mxu0 0
        %573 = vmatpush1.bf16.msra.mxu0 0
        %574 = vmatprep.subr.bf16.mxu0 0
        %575 = vmatpush1.bf16.msra.mxu0 0
        %576 = vmatprep.subr.bf16.mxu0 0
        %577 = vmatpush1.bf16.msra.mxu0 0
        %578 = vmatprep.subr.bf16.mxu0 0
        %579 = vmatpush1.bf16.msra.mxu0 0
        %580 = vmatprep.subr.bf16.mxu0 0
        %581 = vmatpush1.bf16.msra.mxu0 0
        %582 = vmatprep.subr.bf16.mxu0 0
        %583 = vmatpush1.bf16.msra.mxu0 0
        %584 = vmatprep.subr.bf16.mxu0 0
        %585 = vmatpush1.bf16.msra.mxu0 0
        %586 = vmatprep.mubr.bf16.mxu0 0
        %587 = vmatmul.mubr.bf16.gmra.mrb[0].mxu0 %v546
        %v588 = vpop.f32.mrb[0].mxu0
        %v589 = vadd.f32 0.0, %v588
        %v590 = vpop.f32.mrb[0].mxu0
        %v591 = vadd.f32 0.0, %v590
        %v592 = vpop.f32.mrb[0].mxu0
        %v593 = vpop.f32.mrb[0].mxu0
        %594 = vdwg.mxu0
        %v595 = vadd.f32 %v539, %v589
        %v596 = vadd.f32 %v540, %v591
        %597 = vrot.lane.b32.xlu0 %v269, 127
        %v598 = vpop.permute.xlu0 %597
        %599 = vrot.lane.b32.xlu0 %v270, 127
        %v600 = vpop.permute.xlu0 %599
        %vm601 = vcmp.lt.s32.totalorder %v276, 127
        %v602 = vsel %vm601, %v598, %v600
        %v603 = vsel %vm601, %v600, %v598
        %s604 = scalar_lea.vmem %s5, 80
        %v605 = vld [vmem:[%s604] sm:$0xff]
        %v606 = vld [vmem:[%s604 + $0x8] sm:$0xff]
        %v607 = vmul.f32 %v602, %v605
        %v608 = vmul.f32 %v603, %v606
        %s609 = scalar_lea.vmem %s1, 20
        %v610 = vld [vmem:[%s609] sm:$0xf]
        %v611 = vpack.c.bf16 %v607, %v607
        %v612 = vpack.c.bf16 %v608, %v608
        %v614 = vsel %vm303, %v610, 0
        %v617 = vsel %vm307, %v611, 0
        %v620 = vsel %vm307, %v612, 0
        %622 = vmatprep.subr.bf16.mxu0 %v620
        %623 = vmatpush1.bf16.msra.mxu0 %v617
        %624 = vmatprep.subr.bf16.mxu0 0
        %625 = vmatpush1.bf16.msra.mxu0 0
        %626 = vmatprep.subr.bf16.mxu0 0
        %627 = vmatpush1.bf16.msra.mxu0 0
        %628 = vmatprep.subr.bf16.mxu0 0
        %629 = vmatpush1.bf16.msra.mxu0 0
        %630 = vmatprep.subr.bf16.mxu0 0
        %631 = vmatpush1.bf16.msra.mxu0 0
        %632 = vmatprep.subr.bf16.mxu0 0
        %633 = vmatpush1.bf16.msra.mxu0 0
        %634 = vmatprep.subr.bf16.mxu0 0
        %635 = vmatpush1.bf16.msra.mxu0 0
        %636 = vmatprep.subr.bf16.mxu0 0
        %637 = vmatpush1.bf16.msra.mxu0 0
        %638 = vmatprep.subr.bf16.mxu0 0
        %639 = vmatpush1.bf16.msra.mxu0 0
        %640 = vmatprep.subr.bf16.mxu0 0
        %641 = vmatpush1.bf16.msra.mxu0 0
        %642 = vmatprep.subr.bf16.mxu0 0
        %643 = vmatpush1.bf16.msra.mxu0 0
        %644 = vmatprep.subr.bf16.mxu0 0
        %645 = vmatpush1.bf16.msra.mxu0 0
        %646 = vmatprep.subr.bf16.mxu0 0
        %647 = vmatpush1.bf16.msra.mxu0 0
        %648 = vmatprep.subr.bf16.mxu0 0
        %649 = vmatpush1.bf16.msra.mxu0 0
        %650 = vmatprep.subr.bf16.mxu0 0
        %651 = vmatpush1.bf16.msra.mxu0 0
        %652 = vmatprep.subr.bf16.mxu0 0
        %653 = vmatpush1.bf16.msra.mxu0 0
        %654 = vmatprep.mubr.bf16.mxu0 0
        %655 = vmatmul.mubr.bf16.gmra.mrb[0].mxu0 %v614
        %v656 = vpop.f32.mrb[0].mxu0
        %v657 = vadd.f32 0.0, %v656
        %v658 = vpop.f32.mrb[0].mxu0
        %v659 = vadd.f32 0.0, %v658
        %v660 = vpop.f32.mrb[0].mxu0
        %v661 = vpop.f32.mrb[0].mxu0
        %662 = vdwg.mxu0
        %v663 = vadd.f32 %v595, %v657
        %v664 = vadd.f32 %v596, %v659
        %665 = vrot.lane.b32.xlu0 %v269, 113
        %v666 = vpop.permute.xlu0 %665
        %667 = vrot.lane.b32.xlu0 %v270, 113
        %v668 = vpop.permute.xlu0 %667
        %vm669 = vcmp.lt.s32.totalorder %v276, 113
        %v670 = vsel %vm669, %v666, %v668
        %v671 = vsel %vm669, %v668, %v666
        %s672 = scalar_lea.vmem %s5, 96
        %v673 = vld [vmem:[%s672] sm:$0xff]
        %v674 = vld [vmem:[%s672 + $0x8] sm:$0xff]
        %v675 = vmul.f32 %v670, %v673
        %v676 = vmul.f32 %v671, %v674
        %s677 = scalar_lea.vmem %s1, 24
        %v678 = vld [vmem:[%s677] sm:$0xf]
        %v679 = vpack.c.bf16 %v675, %v675
        %v680 = vpack.c.bf16 %v676, %v676
        %v682 = vsel %vm303, %v678, 0
        %v685 = vsel %vm307, %v679, 0
        %v688 = vsel %vm307, %v680, 0
        %690 = vmatprep.subr.bf16.mxu0 %v688
        %691 = vmatpush1.bf16.msra.mxu0 %v685
        %692 = vmatprep.subr.bf16.mxu0 0
        %693 = vmatpush1.bf16.msra.mxu0 0
        %694 = vmatprep.subr.bf16.mxu0 0
        %695 = vmatpush1.bf16.msra.mxu0 0
        %696 = vmatprep.subr.bf16.mxu0 0
        %697 = vmatpush1.bf16.msra.mxu0 0
        %698 = vmatprep.subr.bf16.mxu0 0
        %699 = vmatpush1.bf16.msra.mxu0 0
        %700 = vmatprep.subr.bf16.mxu0 0
        %701 = vmatpush1.bf16.msra.mxu0 0
        %702 = vmatprep.subr.bf16.mxu0 0
        %703 = vmatpush1.bf16.msra.mxu0 0
        %704 = vmatprep.subr.bf16.mxu0 0
        %705 = vmatpush1.bf16.msra.mxu0 0
        %706 = vmatprep.subr.bf16.mxu0 0
        %707 = vmatpush1.bf16.msra.mxu0 0
        %708 = vmatprep.subr.bf16.mxu0 0
        %709 = vmatpush1.bf16.msra.mxu0 0
        %710 = vmatprep.subr.bf16.mxu0 0
        %711 = vmatpush1.bf16.msra.mxu0 0
        %712 = vmatprep.subr.bf16.mxu0 0
        %713 = vmatpush1.bf16.msra.mxu0 0
        %714 = vmatprep.subr.bf16.mxu0 0
        %715 = vmatpush1.bf16.msra.mxu0 0
        %716 = vmatprep.subr.bf16.mxu0 0
        %717 = vmatpush1.bf16.msra.mxu0 0
        %718 = vmatprep.subr.bf16.mxu0 0
        %719 = vmatpush1.bf16.msra.mxu0 0
        %720 = vmatprep.subr.bf16.mxu0 0
        %721 = vmatpush1.bf16.msra.mxu0 0
        %722 = vmatprep.mubr.bf16.mxu0 0
        %723 = vmatmul.mubr.bf16.gmra.mrb[0].mxu0 %v682
        %v724 = vpop.f32.mrb[0].mxu0
        %v725 = vadd.f32 0.0, %v724
        %v726 = vpop.f32.mrb[0].mxu0
        %v727 = vadd.f32 0.0, %v726
        %v728 = vpop.f32.mrb[0].mxu0
        %v729 = vpop.f32.mrb[0].mxu0
        %730 = vdwg.mxu0
        %v731 = vadd.f32 %v663, %v725
        %v732 = vadd.f32 %v664, %v727
        %733 = vrot.lane.b32.xlu0 %v269, 112
        %v734 = vpop.permute.xlu0 %733
        %735 = vrot.lane.b32.xlu0 %v270, 112
        %v736 = vpop.permute.xlu0 %735
        %vm737 = vcmp.lt.s32.totalorder %v276, 112
        %v738 = vsel %vm737, %v734, %v736
        %v739 = vsel %vm737, %v736, %v734
        %s740 = scalar_lea.vmem %s5, 112
        %v741 = vld [vmem:[%s740] sm:$0xff]
        %v742 = vld [vmem:[%s740 + $0x8] sm:$0xff]
        %v743 = vmul.f32 %v738, %v741
        %v744 = vmul.f32 %v739, %v742
        %s745 = scalar_lea.vmem %s1, 28
        %v746 = vld [vmem:[%s745] sm:$0xf]
        %v747 = vpack.c.bf16 %v743, %v743
        %v748 = vpack.c.bf16 %v744, %v744
        %v750 = vsel %vm303, %v746, 0
        %v753 = vsel %vm307, %v747, 0
        %v756 = vsel %vm307, %v748, 0
        %758 = vmatprep.subr.bf16.mxu0 %v756
        %759 = vmatpush1.bf16.msra.mxu0 %v753
        %760 = vmatprep.subr.bf16.mxu0 0
        %761 = vmatpush1.bf16.msra.mxu0 0
        %762 = vmatprep.subr.bf16.mxu0 0
        %763 = vmatpush1.bf16.msra.mxu0 0
        %764 = vmatprep.subr.bf16.mxu0 0
        %765 = vmatpush1.bf16.msra.mxu0 0
        %766 = vmatprep.subr.bf16.mxu0 0
        %767 = vmatpush1.bf16.msra.mxu0 0
        %768 = vmatprep.subr.bf16.mxu0 0
        %769 = vmatpush1.bf16.msra.mxu0 0
        %770 = vmatprep.subr.bf16.mxu0 0
        %771 = vmatpush1.bf16.msra.mxu0 0
        %772 = vmatprep.subr.bf16.mxu0 0
        %773 = vmatpush1.bf16.msra.mxu0 0
        %774 = vmatprep.subr.bf16.mxu0 0
        %775 = vmatpush1.bf16.msra.mxu0 0
        %776 = vmatprep.subr.bf16.mxu0 0
        %777 = vmatpush1.bf16.msra.mxu0 0
        %778 = vmatprep.subr.bf16.mxu0 0
        %779 = vmatpush1.bf16.msra.mxu0 0
        %780 = vmatprep.subr.bf16.mxu0 0
        %781 = vmatpush1.bf16.msra.mxu0 0
        %782 = vmatprep.subr.bf16.mxu0 0
        %783 = vmatpush1.bf16.msra.mxu0 0
        %784 = vmatprep.subr.bf16.mxu0 0
        %785 = vmatpush1.bf16.msra.mxu0 0
        %786 = vmatprep.subr.bf16.mxu0 0
        %787 = vmatpush1.bf16.msra.mxu0 0
        %788 = vmatprep.subr.bf16.mxu0 0
        %789 = vmatpush1.bf16.msra.mxu0 0
        %790 = vmatprep.mubr.bf16.mxu0 0
        %791 = vmatmul.mubr.bf16.gmra.mrb[0].mxu0 %v750
        %v792 = vpop.f32.mrb[0].mxu0
        %v793 = vadd.f32 0.0, %v792
        %v794 = vpop.f32.mrb[0].mxu0
        %v795 = vadd.f32 0.0, %v794
        %v796 = vpop.f32.mrb[0].mxu0
        %v797 = vpop.f32.mrb[0].mxu0
        %798 = vdwg.mxu0
        %v799 = vadd.f32 %v731, %v793
        %v800 = vadd.f32 %v732, %v795
        %801 = vrot.lane.b32.xlu0 %v269, 111
        %v802 = vpop.permute.xlu0 %801
        %803 = vrot.lane.b32.xlu0 %v270, 111
        %v804 = vpop.permute.xlu0 %803
        %vm805 = vcmp.lt.s32.totalorder %v276, 111
        %v806 = vsel %vm805, %v802, %v804
        %v807 = vsel %vm805, %v804, %v802
        %s808 = scalar_lea.vmem %s5, 128
        %v809 = vld [vmem:[%s808] sm:$0xff]
        %v810 = vld [vmem:[%s808 + $0x8] sm:$0xff]
        %v811 = vmul.f32 %v806, %v809
        %v812 = vmul.f32 %v807, %v810
        %s813 = scalar_lea.vmem %s1, 32
        %v814 = vld [vmem:[%s813] sm:$0xf]
        %v815 = vpack.c.bf16 %v811, %v811
        %v816 = vpack.c.bf16 %v812, %v812
        %v818 = vsel %vm303, %v814, 0
        %v821 = vsel %vm307, %v815, 0
        %v824 = vsel %vm307, %v816, 0
        %826 = vmatprep.subr.bf16.mxu0 %v824
        %827 = vmatpush1.bf16.msra.mxu0 %v821
        %828 = vmatprep.subr.bf16.mxu0 0
        %829 = vmatpush1.bf16.msra.mxu0 0
        %830 = vmatprep.subr.bf16.mxu0 0
        %831 = vmatpush1.bf16.msra.mxu0 0
        %832 = vmatprep.subr.bf16.mxu0 0
        %833 = vmatpush1.bf16.msra.mxu0 0
        %834 = vmatprep.subr.bf16.mxu0 0
        %835 = vmatpush1.bf16.msra.mxu0 0
        %836 = vmatprep.subr.bf16.mxu0 0
        %837 = vmatpush1.bf16.msra.mxu0 0
        %838 = vmatprep.subr.bf16.mxu0 0
        %839 = vmatpush1.bf16.msra.mxu0 0
        %840 = vmatprep.subr.bf16.mxu0 0
        %841 = vmatpush1.bf16.msra.mxu0 0
        %842 = vmatprep.subr.bf16.mxu0 0
        %843 = vmatpush1.bf16.msra.mxu0 0
        %844 = vmatprep.subr.bf16.mxu0 0
        %845 = vmatpush1.bf16.msra.mxu0 0
        %846 = vmatprep.subr.bf16.mxu0 0
        %847 = vmatpush1.bf16.msra.mxu0 0
        %848 = vmatprep.subr.bf16.mxu0 0
        %849 = vmatpush1.bf16.msra.mxu0 0
        %850 = vmatprep.subr.bf16.mxu0 0
        %851 = vmatpush1.bf16.msra.mxu0 0
        %852 = vmatprep.subr.bf16.mxu0 0
        %853 = vmatpush1.bf16.msra.mxu0 0
        %854 = vmatprep.subr.bf16.mxu0 0
        %855 = vmatpush1.bf16.msra.mxu0 0
        %856 = vmatprep.subr.bf16.mxu0 0
        %857 = vmatpush1.bf16.msra.mxu0 0
        %858 = vmatprep.mubr.bf16.mxu0 0
        %859 = vmatmul.mubr.bf16.gmra.mrb[0].mxu0 %v818
        %v860 = vpop.f32.mrb[0].mxu0
        %v861 = vadd.f32 0.0, %v860
        %v862 = vpop.f32.mrb[0].mxu0
        %v863 = vadd.f32 0.0, %v862
        %v864 = vpop.f32.mrb[0].mxu0
        %v865 = vpop.f32.mrb[0].mxu0
        %866 = vdwg.mxu0
        %v867 = vadd.f32 %v799, %v861
        %v868 = vadd.f32 %v800, %v863
        %v869 = vld [vmem:[%s2] sm:$0xff]
        %871 = vset.pattern.permute.xlu0 0
        %872 = vperm.xlu0 %871, %v869
        %v873 = vpop.permute.xlu0 %872
        %v875 = vadd.f32 %v867, %v873
        %v876 = vadd.f32 %v868, %v873
        %v877 = vmax.f32 %v875, 0.0
        %v878 = vmax.f32 %v876, 0.0
        %879 = vrot.lane.b32.xlu0 %v877, 17
        %v880 = vpop.permute.xlu0 %879
        %881 = vrot.lane.b32.xlu0 %v878, 17
        %v882 = vpop.permute.xlu0 %881
        %v883 = vsel %vm277, %v880, %v882
        %v884 = vsel %vm277, %v882, %v880
        %v885 = vmul.f32 %v884, %v280
        %v886 = vmul.f32 %v883, %v281
        %v887 = vld [vmem:[%s3] sm:$0xf]
        %v888 = vpack.c.bf16 %v885, %v885
        %v889 = vpack.c.bf16 %v886, %v886
        %890 = vrot.lane.b32.xlu0 %v877, 16
        %v891 = vpop.permute.xlu0 %890
        %892 = vrot.lane.b32.xlu0 %v878, 16
        %v893 = vpop.permute.xlu0 %892
        %v894 = vsel %vm291, %v891, %v893
        %v895 = vsel %vm291, %v893, %v891
        %v896 = vmul.f32 %v895, %v295
        %v897 = vmul.f32 %v894, %v296
        %s898 = scalar_lea.vmem %s3, 4
        %v899 = vld [vmem:[%s898] sm:$0xf]
        %v900 = vpack.c.bf16 %v896, %v896
        %v901 = vpack.c.bf16 %v897, %v897
        %v903 = vsel %vm303, %v899, 0
        %v906 = vsel %vm307, %v900, 0
        %v909 = vsel %vm307, %v901, 0
        %911 = vmatprep.subr.bf16.mxu0 %v909
        %912 = vmatpush1.bf16.msra.mxu0 %v906
        %913 = vmatprep.subr.bf16.mxu0 0
        %914 = vmatpush1.bf16.msra.mxu0 0
        %915 = vmatprep.subr.bf16.mxu0 0
        %916 = vmatpush1.bf16.msra.mxu0 0
        %917 = vmatprep.subr.bf16.mxu0 0
        %918 = vmatpush1.bf16.msra.mxu0 0
        %919 = vmatprep.subr.bf16.mxu0 0
        %920 = vmatpush1.bf16.msra.mxu0 0
        %921 = vmatprep.subr.bf16.mxu0 0
        %922 = vmatpush1.bf16.msra.mxu0 0
        %923 = vmatprep.subr.bf16.mxu0 0
        %924 = vmatpush1.bf16.msra.mxu0 0
        %925 = vmatprep.subr.bf16.mxu0 0
        %926 = vmatpush1.bf16.msra.mxu0 0
        %927 = vmatprep.subr.bf16.mxu0 0
        %928 = vmatpush1.bf16.msra.mxu0 0
        %929 = vmatprep.subr.bf16.mxu0 0
        %930 = vmatpush1.bf16.msra.mxu0 0
        %931 = vmatprep.subr.bf16.mxu0 0
        %932 = vmatpush1.bf16.msra.mxu0 0
        %933 = vmatprep.subr.bf16.mxu0 0
        %934 = vmatpush1.bf16.msra.mxu0 0
        %935 = vmatprep.subr.bf16.mxu0 0
        %936 = vmatpush1.bf16.msra.mxu0 0
        %937 = vmatprep.subr.bf16.mxu0 0
        %938 = vmatpush1.bf16.msra.mxu0 0
        %939 = vmatprep.subr.bf16.mxu0 0
        %940 = vmatpush1.bf16.msra.mxu0 0
        %941 = vmatprep.subr.bf16.mxu0 0
        %942 = vmatpush1.bf16.msra.mxu0 0
        %943 = vmatprep.mubr.bf16.mxu0 0
        %944 = vmatmul.mubr.bf16.gmra.mrb[0].mxu0 %v903
        %v945 = vpop.f32.mrb[0].mxu0
        %v946 = vadd.f32 0.0, %v945
        %v947 = vpop.f32.mrb[0].mxu0
        %v948 = vadd.f32 0.0, %v947
        %v949 = vpop.f32.mrb[0].mxu0
        %v950 = vpop.f32.mrb[0].mxu0
        %951 = vdwg.mxu0
        %v953 = vsel %vm303, %v887, 0
        %v956 = vsel %vm307, %v888, 0
        %v959 = vsel %vm307, %v889, 0
        %961 = vmatprep.subr.bf16.mxu0 %v959
        %962 = vmatpush1.bf16.msra.mxu0 %v956
        %963 = vmatprep.subr.bf16.mxu0 0
        %964 = vmatpush1.bf16.msra.mxu0 0
        %965 = vmatprep.subr.bf16.mxu0 0
        %966 = vmatpush1.bf16.msra.mxu0 0
        %967 = vmatprep.subr.bf16.mxu0 0
        %968 = vmatpush1.bf16.msra.mxu0 0
        %969 = vmatprep.subr.bf16.mxu0 0
        %970 = vmatpush1.bf16.msra.mxu0 0
        %971 = vmatprep.subr.bf16.mxu0 0
        %972 = vmatpush1.bf16.msra.mxu0 0
        %973 = vmatprep.subr.bf16.mxu0 0
        %974 = vmatpush1.bf16.msra.mxu0 0
        %975 = vmatprep.subr.bf16.mxu0 0
        %976 = vmatpush1.bf16.msra.mxu0 0
        %977 = vmatprep.subr.bf16.mxu0 0
        %978 = vmatpush1.bf16.msra.mxu0 0
        %979 = vmatprep.subr.bf16.mxu0 0
        %980 = vmatpush1.bf16.msra.mxu0 0
        %981 = vmatprep.subr.bf16.mxu0 0
        %982 = vmatpush1.bf16.msra.mxu0 0
        %983 = vmatprep.subr.bf16.mxu0 0
        %984 = vmatpush1.bf16.msra.mxu0 0
        %985 = vmatprep.subr.bf16.mxu0 0
        %986 = vmatpush1.bf16.msra.mxu0 0
        %987 = vmatprep.subr.bf16.mxu0 0
        %988 = vmatpush1.bf16.msra.mxu0 0
        %989 = vmatprep.subr.bf16.mxu0 0
        %990 = vmatpush1.bf16.msra.mxu0 0
        %991 = vmatprep.subr.bf16.mxu0 0
        %992 = vmatpush1.bf16.msra.mxu0 0
        %993 = vmatprep.mubr.bf16.mxu0 0
        %994 = vmatmul.mubr.bf16.gmra.mrb[0].mxu0 %v953
        %v995 = vpop.f32.mrb[0].mxu0
        %v996 = vadd.f32 %v946, %v995
        %v997 = vpop.f32.mrb[0].mxu0
        %v998 = vadd.f32 %v948, %v997
        %v999 = vpop.f32.mrb[0].mxu0
        %v1000 = vpop.f32.mrb[0].mxu0
        %1001 = vdwg.mxu0
        %1002 = vrot.lane.b32.xlu0 %v877, 15
        %v1003 = vpop.permute.xlu0 %1002
        %1004 = vrot.lane.b32.xlu0 %v878, 15
        %v1005 = vpop.permute.xlu0 %1004
        %v1006 = vsel %vm409, %v1003, %v1005
        %v1007 = vsel %vm409, %v1005, %v1003
        %v1008 = vmul.f32 %v1007, %v413
        %v1009 = vmul.f32 %v1006, %v414
        %s1010 = scalar_lea.vmem %s3, 8
        %v1011 = vld [vmem:[%s1010] sm:$0xf]
        %v1012 = vpack.c.bf16 %v1008, %v1008
        %v1013 = vpack.c.bf16 %v1009, %v1009
        %v1015 = vsel %vm303, %v1011, 0
        %v1018 = vsel %vm307, %v1012, 0
        %v1021 = vsel %vm307, %v1013, 0
        %1023 = vmatprep.subr.bf16.mxu0 %v1021
        %1024 = vmatpush1.bf16.msra.mxu0 %v1018
        %1025 = vmatprep.subr.bf16.mxu0 0
        %1026 = vmatpush1.bf16.msra.mxu0 0
        %1027 = vmatprep.subr.bf16.mxu0 0
        %1028 = vmatpush1.bf16.msra.mxu0 0
        %1029 = vmatprep.subr.bf16.mxu0 0
        %1030 = vmatpush1.bf16.msra.mxu0 0
        %1031 = vmatprep.subr.bf16.mxu0 0
        %1032 = vmatpush1.bf16.msra.mxu0 0
        %1033 = vmatprep.subr.bf16.mxu0 0
        %1034 = vmatpush1.bf16.msra.mxu0 0
        %1035 = vmatprep.subr.bf16.mxu0 0
        %1036 = vmatpush1.bf16.msra.mxu0 0
        %1037 = vmatprep.subr.bf16.mxu0 0
        %1038 = vmatpush1.bf16.msra.mxu0 0
        %1039 = vmatprep.subr.bf16.mxu0 0
        %1040 = vmatpush1.bf16.msra.mxu0 0
        %1041 = vmatprep.subr.bf16.mxu0 0
        %1042 = vmatpush1.bf16.msra.mxu0 0
        %1043 = vmatprep.subr.bf16.mxu0 0
        %1044 = vmatpush1.bf16.msra.mxu0 0
        %1045 = vmatprep.subr.bf16.mxu0 0
        %1046 = vmatpush1.bf16.msra.mxu0 0
        %1047 = vmatprep.subr.bf16.mxu0 0
        %1048 = vmatpush1.bf16.msra.mxu0 0
        %1049 = vmatprep.subr.bf16.mxu0 0
        %1050 = vmatpush1.bf16.msra.mxu0 0
        %1051 = vmatprep.subr.bf16.mxu0 0
        %1052 = vmatpush1.bf16.msra.mxu0 0
        %1053 = vmatprep.subr.bf16.mxu0 0
        %1054 = vmatpush1.bf16.msra.mxu0 0
        %1055 = vmatprep.mubr.bf16.mxu0 0
        %1056 = vmatmul.mubr.bf16.gmra.mrb[0].mxu0 %v1015
        %v1057 = vpop.f32.mrb[0].mxu0
        %v1058 = vadd.f32 0.0, %v1057
        %v1059 = vpop.f32.mrb[0].mxu0
        %v1060 = vadd.f32 0.0, %v1059
        %v1061 = vpop.f32.mrb[0].mxu0
        %v1062 = vpop.f32.mrb[0].mxu0
        %1063 = vdwg.mxu0
        %v1064 = vadd.f32 %v996, %v1058
        %v1065 = vadd.f32 %v998, %v1060
        %1066 = vrot.lane.b32.xlu0 %v877, 1
        %v1067 = vpop.permute.xlu0 %1066
        %1068 = vrot.lane.b32.xlu0 %v878, 1
        %v1069 = vpop.permute.xlu0 %1068
        %v1070 = vsel %vm477, %v1067, %v1069
        %v1071 = vsel %vm477, %v1069, %v1067
        %v1072 = vmul.f32 %v1071, %v481
        %v1073 = vmul.f32 %v1070, %v482
        %s1074 = scalar_lea.vmem %s3, 12
        %v1075 = vld [vmem:[%s1074] sm:$0xf]
        %v1076 = vpack.c.bf16 %v1072, %v1072
        %v1077 = vpack.c.bf16 %v1073, %v1073
        %v1079 = vsel %vm303, %v1075, 0
        %v1082 = vsel %vm307, %v1076, 0
        %v1085 = vsel %vm307, %v1077, 0
        %1087 = vmatprep.subr.bf16.mxu0 %v1085
        %1088 = vmatpush1.bf16.msra.mxu0 %v1082
        %1089 = vmatprep.subr.bf16.mxu0 0
        %1090 = vmatpush1.bf16.msra.mxu0 0
        %1091 = vmatprep.subr.bf16.mxu0 0
        %1092 = vmatpush1.bf16.msra.mxu0 0
        %1093 = vmatprep.subr.bf16.mxu0 0
        %1094 = vmatpush1.bf16.msra.mxu0 0
        %1095 = vmatprep.subr.bf16.mxu0 0
        %1096 = vmatpush1.bf16.msra.mxu0 0
        %1097 = vmatprep.subr.bf16.mxu0 0
        %1098 = vmatpush1.bf16.msra.mxu0 0
        %1099 = vmatprep.subr.bf16.mxu0 0
        %1100 = vmatpush1.bf16.msra.mxu0 0
        %1101 = vmatprep.subr.bf16.mxu0 0
        %1102 = vmatpush1.bf16.msra.mxu0 0
        %1103 = vmatprep.subr.bf16.mxu0 0
        %1104 = vmatpush1.bf16.msra.mxu0 0
        %1105 = vmatprep.subr.bf16.mxu0 0
        %1106 = vmatpush1.bf16.msra.mxu0 0
        %1107 = vmatprep.subr.bf16.mxu0 0
        %1108 = vmatpush1.bf16.msra.mxu0 0
        %1109 = vmatprep.subr.bf16.mxu0 0
        %1110 = vmatpush1.bf16.msra.mxu0 0
        %1111 = vmatprep.subr.bf16.mxu0 0
        %1112 = vmatpush1.bf16.msra.mxu0 0
        %1113 = vmatprep.subr.bf16.mxu0 0
        %1114 = vmatpush1.bf16.msra.mxu0 0
        %1115 = vmatprep.subr.bf16.mxu0 0
        %1116 = vmatpush1.bf16.msra.mxu0 0
        %1117 = vmatprep.subr.bf16.mxu0 0
        %1118 = vmatpush1.bf16.msra.mxu0 0
        %1119 = vmatprep.mubr.bf16.mxu0 0
        %1120 = vmatmul.mubr.bf16.gmra.mrb[0].mxu0 %v1079
        %v1121 = vpop.f32.mrb[0].mxu0
        %v1122 = vadd.f32 0.0, %v1121
        %v1123 = vpop.f32.mrb[0].mxu0
        %v1124 = vadd.f32 0.0, %v1123
        %v1125 = vpop.f32.mrb[0].mxu0
        %v1126 = vpop.f32.mrb[0].mxu0
        %1127 = vdwg.mxu0
        %v1128 = vadd.f32 %v1064, %v1122
        %v1129 = vadd.f32 %v1065, %v1124
        %s1130 = scalar_lea.vmem %s3, 16
        %v1131 = vld [vmem:[%s1130] sm:$0xf]
        %v1132 = vpack.c.bf16 %v877, %v877
        %v1133 = vpack.c.bf16 %v878, %v878
        %v1135 = vsel %vm303, %v1131, 0
        %v1138 = vsel %vm307, %v1132, 0
        %v1141 = vsel %vm307, %v1133, 0
        %1143 = vmatprep.subr.bf16.mxu0 %v1141
        %1144 = vmatpush1.bf16.msra.mxu0 %v1138
        %1145 = vmatprep.subr.bf16.mxu0 0
        %1146 = vmatpush1.bf16.msra.mxu0 0
        %1147 = vmatprep.subr.bf16.mxu0 0
        %1148 = vmatpush1.bf16.msra.mxu0 0
        %1149 = vmatprep.subr.bf16.mxu0 0
        %1150 = vmatpush1.bf16.msra.mxu0 0
        %1151 = vmatprep.subr.bf16.mxu0 0
        %1152 = vmatpush1.bf16.msra.mxu0 0
        %1153 = vmatprep.subr.bf16.mxu0 0
        %1154 = vmatpush1.bf16.msra.mxu0 0
        %1155 = vmatprep.subr.bf16.mxu0 0
        %1156 = vmatpush1.bf16.msra.mxu0 0
        %1157 = vmatprep.subr.bf16.mxu0 0
        %1158 = vmatpush1.bf16.msra.mxu0 0
        %1159 = vmatprep.subr.bf16.mxu0 0
        %1160 = vmatpush1.bf16.msra.mxu0 0
        %1161 = vmatprep.subr.bf16.mxu0 0
        %1162 = vmatpush1.bf16.msra.mxu0 0
        %1163 = vmatprep.subr.bf16.mxu0 0
        %1164 = vmatpush1.bf16.msra.mxu0 0
        %1165 = vmatprep.subr.bf16.mxu0 0
        %1166 = vmatpush1.bf16.msra.mxu0 0
        %1167 = vmatprep.subr.bf16.mxu0 0
        %1168 = vmatpush1.bf16.msra.mxu0 0
        %1169 = vmatprep.subr.bf16.mxu0 0
        %1170 = vmatpush1.bf16.msra.mxu0 0
        %1171 = vmatprep.subr.bf16.mxu0 0
        %1172 = vmatpush1.bf16.msra.mxu0 0
        %1173 = vmatprep.subr.bf16.mxu0 0
        %1174 = vmatpush1.bf16.msra.mxu0 0
        %1175 = vmatprep.mubr.bf16.mxu0 0
        %1176 = vmatmul.mubr.bf16.gmra.mrb[0].mxu0 %v1135
        %v1177 = vpop.f32.mrb[0].mxu0
        %v1178 = vadd.f32 0.0, %v1177
        %v1179 = vpop.f32.mrb[0].mxu0
        %v1180 = vadd.f32 0.0, %v1179
        %v1181 = vpop.f32.mrb[0].mxu0
        %v1182 = vpop.f32.mrb[0].mxu0
        %1183 = vdwg.mxu0
        %v1184 = vadd.f32 %v1128, %v1178
        %v1185 = vadd.f32 %v1129, %v1180
        %1186 = vrot.lane.b32.xlu0 %v877, 127
        %v1187 = vpop.permute.xlu0 %1186
        %1188 = vrot.lane.b32.xlu0 %v878, 127
        %v1189 = vpop.permute.xlu0 %1188
        %v1190 = vsel %vm601, %v1187, %v1189
        %v1191 = vsel %vm601, %v1189, %v1187
        %v1192 = vmul.f32 %v1190, %v605
        %v1193 = vmul.f32 %v1191, %v606
        %s1194 = scalar_lea.vmem %s3, 20
        %v1195 = vld [vmem:[%s1194] sm:$0xf]
        %v1196 = vpack.c.bf16 %v1192, %v1192
        %v1197 = vpack.c.bf16 %v1193, %v1193
        %v1199 = vsel %vm303, %v1195, 0
        %v1202 = vsel %vm307, %v1196, 0
        %v1205 = vsel %vm307, %v1197, 0
        %1207 = vmatprep.subr.bf16.mxu0 %v1205
        %1208 = vmatpush1.bf16.msra.mxu0 %v1202
        %1209 = vmatprep.subr.bf16.mxu0 0
        %1210 = vmatpush1.bf16.msra.mxu0 0
        %1211 = vmatprep.subr.bf16.mxu0 0
        %1212 = vmatpush1.bf16.msra.mxu0 0
        %1213 = vmatprep.subr.bf16.mxu0 0
        %1214 = vmatpush1.bf16.msra.mxu0 0
        %1215 = vmatprep.subr.bf16.mxu0 0
        %1216 = vmatpush1.bf16.msra.mxu0 0
        %1217 = vmatprep.subr.bf16.mxu0 0
        %1218 = vmatpush1.bf16.msra.mxu0 0
        %1219 = vmatprep.subr.bf16.mxu0 0
        %1220 = vmatpush1.bf16.msra.mxu0 0
        %1221 = vmatprep.subr.bf16.mxu0 0
        %1222 = vmatpush1.bf16.msra.mxu0 0
        %1223 = vmatprep.subr.bf16.mxu0 0
        %1224 = vmatpush1.bf16.msra.mxu0 0
        %1225 = vmatprep.subr.bf16.mxu0 0
        %1226 = vmatpush1.bf16.msra.mxu0 0
        %1227 = vmatprep.subr.bf16.mxu0 0
        %1228 = vmatpush1.bf16.msra.mxu0 0
        %1229 = vmatprep.subr.bf16.mxu0 0
        %1230 = vmatpush1.bf16.msra.mxu0 0
        %1231 = vmatprep.subr.bf16.mxu0 0
        %1232 = vmatpush1.bf16.msra.mxu0 0
        %1233 = vmatprep.subr.bf16.mxu0 0
        %1234 = vmatpush1.bf16.msra.mxu0 0
        %1235 = vmatprep.subr.bf16.mxu0 0
        %1236 = vmatpush1.bf16.msra.mxu0 0
        %1237 = vmatprep.subr.bf16.mxu0 0
        %1238 = vmatpush1.bf16.msra.mxu0 0
        %1239 = vmatprep.mubr.bf16.mxu0 0
        %1240 = vmatmul.mubr.bf16.gmra.mrb[0].mxu0 %v1199
        %v1241 = vpop.f32.mrb[0].mxu0
        %v1242 = vadd.f32 0.0, %v1241
        %v1243 = vpop.f32.mrb[0].mxu0
        %v1244 = vadd.f32 0.0, %v1243
        %v1245 = vpop.f32.mrb[0].mxu0
        %v1246 = vpop.f32.mrb[0].mxu0
        %1247 = vdwg.mxu0
        %v1248 = vadd.f32 %v1184, %v1242
        %v1249 = vadd.f32 %v1185, %v1244
        %1250 = vrot.lane.b32.xlu0 %v877, 113
        %v1251 = vpop.permute.xlu0 %1250
        %1252 = vrot.lane.b32.xlu0 %v878, 113
        %v1253 = vpop.permute.xlu0 %1252
        %v1254 = vsel %vm669, %v1251, %v1253
        %v1255 = vsel %vm669, %v1253, %v1251
        %v1256 = vmul.f32 %v1254, %v673
        %v1257 = vmul.f32 %v1255, %v674
        %s1258 = scalar_lea.vmem %s3, 24
        %v1259 = vld [vmem:[%s1258] sm:$0xf]
        %v1260 = vpack.c.bf16 %v1256, %v1256
        %v1261 = vpack.c.bf16 %v1257, %v1257
        %v1263 = vsel %vm303, %v1259, 0
        %v1266 = vsel %vm307, %v1260, 0
        %v1269 = vsel %vm307, %v1261, 0
        %1271 = vmatprep.subr.bf16.mxu0 %v1269
        %1272 = vmatpush1.bf16.msra.mxu0 %v1266
        %1273 = vmatprep.subr.bf16.mxu0 0
        %1274 = vmatpush1.bf16.msra.mxu0 0
        %1275 = vmatprep.subr.bf16.mxu0 0
        %1276 = vmatpush1.bf16.msra.mxu0 0
        %1277 = vmatprep.subr.bf16.mxu0 0
        %1278 = vmatpush1.bf16.msra.mxu0 0
        %1279 = vmatprep.subr.bf16.mxu0 0
        %1280 = vmatpush1.bf16.msra.mxu0 0
        %1281 = vmatprep.subr.bf16.mxu0 0
        %1282 = vmatpush1.bf16.msra.mxu0 0
        %1283 = vmatprep.subr.bf16.mxu0 0
        %1284 = vmatpush1.bf16.msra.mxu0 0
        %1285 = vmatprep.subr.bf16.mxu0 0
        %1286 = vmatpush1.bf16.msra.mxu0 0
        %1287 = vmatprep.subr.bf16.mxu0 0
        %1288 = vmatpush1.bf16.msra.mxu0 0
        %1289 = vmatprep.subr.bf16.mxu0 0
        %1290 = vmatpush1.bf16.msra.mxu0 0
        %1291 = vmatprep.subr.bf16.mxu0 0
        %1292 = vmatpush1.bf16.msra.mxu0 0
        %1293 = vmatprep.subr.bf16.mxu0 0
        %1294 = vmatpush1.bf16.msra.mxu0 0
        %1295 = vmatprep.subr.bf16.mxu0 0
        %1296 = vmatpush1.bf16.msra.mxu0 0
        %1297 = vmatprep.subr.bf16.mxu0 0
        %1298 = vmatpush1.bf16.msra.mxu0 0
        %1299 = vmatprep.subr.bf16.mxu0 0
        %1300 = vmatpush1.bf16.msra.mxu0 0
        %1301 = vmatprep.subr.bf16.mxu0 0
        %1302 = vmatpush1.bf16.msra.mxu0 0
        %1303 = vmatprep.mubr.bf16.mxu0 0
        %1304 = vmatmul.mubr.bf16.gmra.mrb[0].mxu0 %v1263
        %v1305 = vpop.f32.mrb[0].mxu0
        %v1306 = vadd.f32 0.0, %v1305
        %v1307 = vpop.f32.mrb[0].mxu0
        %v1308 = vadd.f32 0.0, %v1307
        %v1309 = vpop.f32.mrb[0].mxu0
        %v1310 = vpop.f32.mrb[0].mxu0
        %1311 = vdwg.mxu0
        %v1312 = vadd.f32 %v1248, %v1306
        %v1313 = vadd.f32 %v1249, %v1308
        %1314 = vrot.lane.b32.xlu0 %v877, 112
        %v1315 = vpop.permute.xlu0 %1314
        %1316 = vrot.lane.b32.xlu0 %v878, 112
        %v1317 = vpop.permute.xlu0 %1316
        %v1318 = vsel %vm737, %v1315, %v1317
        %v1319 = vsel %vm737, %v1317, %v1315
        %v1320 = vmul.f32 %v1318, %v741
        %v1321 = vmul.f32 %v1319, %v742
        %s1322 = scalar_lea.vmem %s3, 28
        %v1323 = vld [vmem:[%s1322] sm:$0xf]
        %v1324 = vpack.c.bf16 %v1320, %v1320
        %v1325 = vpack.c.bf16 %v1321, %v1321
        %v1327 = vsel %vm303, %v1323, 0
        %v1330 = vsel %vm307, %v1324, 0
        %v1333 = vsel %vm307, %v1325, 0
        %1335 = vmatprep.subr.bf16.mxu0 %v1333
        %1336 = vmatpush1.bf16.msra.mxu0 %v1330
        %1337 = vmatprep.subr.bf16.mxu0 0
        %1338 = vmatpush1.bf16.msra.mxu0 0
        %1339 = vmatprep.subr.bf16.mxu0 0
        %1340 = vmatpush1.bf16.msra.mxu0 0
        %1341 = vmatprep.subr.bf16.mxu0 0
        %1342 = vmatpush1.bf16.msra.mxu0 0
        %1343 = vmatprep.subr.bf16.mxu0 0
        %1344 = vmatpush1.bf16.msra.mxu0 0
        %1345 = vmatprep.subr.bf16.mxu0 0
        %1346 = vmatpush1.bf16.msra.mxu0 0
        %1347 = vmatprep.subr.bf16.mxu0 0
        %1348 = vmatpush1.bf16.msra.mxu0 0
        %1349 = vmatprep.subr.bf16.mxu0 0
        %1350 = vmatpush1.bf16.msra.mxu0 0
        %1351 = vmatprep.subr.bf16.mxu0 0
        %1352 = vmatpush1.bf16.msra.mxu0 0
        %1353 = vmatprep.subr.bf16.mxu0 0
        %1354 = vmatpush1.bf16.msra.mxu0 0
        %1355 = vmatprep.subr.bf16.mxu0 0
        %1356 = vmatpush1.bf16.msra.mxu0 0
        %1357 = vmatprep.subr.bf16.mxu0 0
        %1358 = vmatpush1.bf16.msra.mxu0 0
        %1359 = vmatprep.subr.bf16.mxu0 0
        %1360 = vmatpush1.bf16.msra.mxu0 0
        %1361 = vmatprep.subr.bf16.mxu0 0
        %1362 = vmatpush1.bf16.msra.mxu0 0
        %1363 = vmatprep.subr.bf16.mxu0 0
        %1364 = vmatpush1.bf16.msra.mxu0 0
        %1365 = vmatprep.subr.bf16.mxu0 0
        %1366 = vmatpush1.bf16.msra.mxu0 0
        %1367 = vmatprep.mubr.bf16.mxu0 0
        %1368 = vmatmul.mubr.bf16.gmra.mrb[0].mxu0 %v1327
        %v1369 = vpop.f32.mrb[0].mxu0
        %v1370 = vadd.f32 0.0, %v1369
        %v1371 = vpop.f32.mrb[0].mxu0
        %v1372 = vadd.f32 0.0, %v1371
        %v1373 = vpop.f32.mrb[0].mxu0
        %v1374 = vpop.f32.mrb[0].mxu0
        %1375 = vdwg.mxu0
        %v1376 = vadd.f32 %v1312, %v1370
        %v1377 = vadd.f32 %v1313, %v1372
        %1378 = vrot.lane.b32.xlu0 %v877, 111
        %v1379 = vpop.permute.xlu0 %1378
        %1380 = vrot.lane.b32.xlu0 %v878, 111
        %v1381 = vpop.permute.xlu0 %1380
        %v1382 = vsel %vm805, %v1379, %v1381
        %v1383 = vsel %vm805, %v1381, %v1379
        %v1384 = vmul.f32 %v1382, %v809
        %v1385 = vmul.f32 %v1383, %v810
        %s1386 = scalar_lea.vmem %s3, 32
        %v1387 = vld [vmem:[%s1386] sm:$0xf]
        %v1388 = vpack.c.bf16 %v1384, %v1384
        %v1389 = vpack.c.bf16 %v1385, %v1385
        %v1391 = vsel %vm303, %v1387, 0
        %v1394 = vsel %vm307, %v1388, 0
        %v1397 = vsel %vm307, %v1389, 0
        %1399 = vmatprep.subr.bf16.mxu0 %v1397
        %1400 = vmatpush1.bf16.msra.mxu0 %v1394
        %1401 = vmatprep.subr.bf16.mxu0 0
        %1402 = vmatpush1.bf16.msra.mxu0 0
        %1403 = vmatprep.subr.bf16.mxu0 0
        %1404 = vmatpush1.bf16.msra.mxu0 0
        %1405 = vmatprep.subr.bf16.mxu0 0
        %1406 = vmatpush1.bf16.msra.mxu0 0
        %1407 = vmatprep.subr.bf16.mxu0 0
        %1408 = vmatpush1.bf16.msra.mxu0 0
        %1409 = vmatprep.subr.bf16.mxu0 0
        %1410 = vmatpush1.bf16.msra.mxu0 0
        %1411 = vmatprep.subr.bf16.mxu0 0
        %1412 = vmatpush1.bf16.msra.mxu0 0
        %1413 = vmatprep.subr.bf16.mxu0 0
        %1414 = vmatpush1.bf16.msra.mxu0 0
        %1415 = vmatprep.subr.bf16.mxu0 0
        %1416 = vmatpush1.bf16.msra.mxu0 0
        %1417 = vmatprep.subr.bf16.mxu0 0
        %1418 = vmatpush1.bf16.msra.mxu0 0
        %1419 = vmatprep.subr.bf16.mxu0 0
        %1420 = vmatpush1.bf16.msra.mxu0 0
        %1421 = vmatprep.subr.bf16.mxu0 0
        %1422 = vmatpush1.bf16.msra.mxu0 0
        %1423 = vmatprep.subr.bf16.mxu0 0
        %1424 = vmatpush1.bf16.msra.mxu0 0
        %1425 = vmatprep.subr.bf16.mxu0 0
        %1426 = vmatpush1.bf16.msra.mxu0 0
        %1427 = vmatprep.subr.bf16.mxu0 0
        %1428 = vmatpush1.bf16.msra.mxu0 0
        %1429 = vmatprep.subr.bf16.mxu0 0
        %1430 = vmatpush1.bf16.msra.mxu0 0
        %1431 = vmatprep.mubr.bf16.mxu0 0
        %1432 = vmatmul.mubr.bf16.gmra.mrb[0].mxu0 %v1391
        %v1433 = vpop.f32.mrb[0].mxu0
        %v1434 = vadd.f32 0.0, %v1433
        %v1435 = vpop.f32.mrb[0].mxu0
        %v1436 = vadd.f32 0.0, %v1435
        %v1437 = vpop.f32.mrb[0].mxu0
        %v1438 = vpop.f32.mrb[0].mxu0
        %1439 = vdwg.mxu0
        %v1440 = vadd.f32 %v1376, %v1434
        %v1441 = vadd.f32 %v1377, %v1436
        %v1442 = vld [vmem:[%s4] sm:$0xff]
        %1444 = vset.pattern.permute.xlu0 0
        %1445 = vperm.xlu0 %1444, %v1442
        %v1446 = vpop.permute.xlu0 %1445
        %v1448 = vadd.f32 %v1440, %v1446
        %v1449 = vadd.f32 %v1441, %v1446
        %v1450 = vadd.f32 %v1448, %v269
        %v1451 = vadd.f32 %v1449, %v270
        %v1452 = vmax.f32 %v1450, 0.0
        %v1453 = vmax.f32 %v1451, 0.0
        %1454 = vst [vmem:[%s267] sm:$0xff] %v1452
        %1455 = vst [vmem:[%s267 + $0x8] sm:$0xff] %v1453
        %s1456 = sand.u32 %s162, 1
        %s1457 = scalar_lea.sflag [#allocation4], %s1456
        %s1458 = sand.u32 %s162, 1
        %s1459 = smul.addr %s1458, 16
        %s1460 = scalar_lea.vmem [#allocation5], %s1459
        // Predicated region
        $region49: #{tpu_custom_call.1} parent=43 // pred_check
          %p1461 = pneg %p172
        $region50: #{tpu_custom_call.1} parent=43 // pred_check_branch
          %1463 = sbr.rel (%p1461) target = $region52
        $region51: #{tpu_custom_call.1} parent=43 // pred_region
          %s1465 = ssub.s32 256, 256
          %1466 = vsyncadd %s1457, %s1465
          %s1467 = smul.addr %s23, 2
          %s1468 = smul.addr %s1467, 128
          %s1469 = scalar_lea.hbm %s6, %s1468
          %s1471 = sshll.u32 %s1460, 4
          %s1472 = int_to_ptr.vmem [resolvable:$true] %s1471
          %1474 = dma.vmem_to_hbm [thread:$0]  %s1472, 256, %s1469, %s1457
        $region52: #{tpu_custom_call.1} parent=43 // pred_fallthru
          _
      $region44: #{tpu_custom_call.1} parent=5 // pred_fallthru
        _
      %p1475 = scmp.le.s32.totalorder 2, %s18
      // Predicated region
      $region53: #{tpu_custom_call.1} parent=5 // pred_check
        %p1476 = pneg %p1475
      $region54: #{tpu_custom_call.1} parent=5 // pred_check_branch
        %1478 = sbr.rel (%p1476) target = $region56
      $region55: #{tpu_custom_call.1} parent=5 // pred_region
        %s1479 = ssub.s32 %s18, 2
        // Predicated region
        $region57: #{tpu_custom_call.1} parent=55 // pred_check
          %p1480 = pneg %p178
        $region58: #{tpu_custom_call.1} parent=55 // pred_check_branch
          %1482 = sbr.rel (%p1480) target = $region60
        $region59: #{tpu_custom_call.1} parent=55 // pred_region
          %s1483 = sand.u32 %s163, 1
          %s1484 = scalar_lea.sflag [#allocation4], %s1483
          %s1485 = sand.u32 %s163, 1
          %s1486 = smul.addr %s1485, 16
          %s1487 = scalar_lea.vmem [#allocation5], %s1486
          %1488 = dma.done %s1484, 256
        $region60: #{tpu_custom_call.1} parent=55 // pred_fallthru
          _
      $region56: #{tpu_custom_call.1} parent=5 // pred_fallthru
        _
    $region6: #{tpu_custom_call.1} parent=1 // loop_footer
      %s22 = sadd.s32 1, %s18
    $region7: #{tpu_custom_call.1} parent=1 // loop_footer_branch
      %17 = sbr.rel target = $region3
    $region8: #{tpu_custom_call.1} parent=1 // loop_exit
      _
    %1489 = vsyncpa [#allocation3], 1
    %s1490 = scalar_lea.sflag [#allocation3], 1
    %1491 = vsyncpa %s1490, 1
    %1492 = vsyncpa [#allocation4], 1
    %s1493 = scalar_lea.sflag [#allocation4], 1
    %1494 = vsyncpa %s1493, 1

</llo_original>
